<compile_context>
chip_gen: v7x
topology: tpu7x:2x2x1
jax: 0.10.0
libtpu: 0.0.40
codegen_flags: <defaults>
</compile_context>

<pallas_src>
import functools

import jax
import jax.numpy as jnp
from jax import lax
from jax.experimental import pallas as pl
from jax.experimental.pallas import tpu as pltpu

_VMEM_LIMIT = 48 * 1024 * 1024


# ------------------------------------------------------------------
# tiling helpers
# ------------------------------------------------------------------

def _pick_row_tile(n, target=512):
    """Largest multiple-of-8 divisor of n that is <= target.

    Falls back to the full extent only when n has no multiple-of-8 divisor
    (i.e. n % 8 != 0), since a (8,128)-legal row tile must then be full.
    """
    t = min(target, n)
    t -= t % 8
    while t >= 8:
        if n % t == 0:
            return t
        t -= 8
    return n


def _pick_channel_tile(c, target=256):
    """Largest multiple-of-128 tile <= target dividing c, else the full c."""
    if c % 128 == 0:
        t = min(target, c)
        t -= t % 128
        while t >= 128:
            if c % t == 0:
                return t
            t -= 128
    return c


def _pick_h_tile(h, target=64):
    """Returns (row_tile, halo_block_rows) for the depthwise conv."""
    if h % 8 != 0:
        return h, h          # single full-H tile; halo blocks degenerate (masked)
    t = min(target, h)
    t -= t % 8
    while t >= 8:
        if h % t == 0:
            return t, 8
        t -= 8
    return h, 8


# ------------------------------------------------------------------
# Fused LayerNorm (WithBias) + 1x1 conv (matmul), row-tiled over N = B*H*W
# ------------------------------------------------------------------

def _ln_matmul_kernel(x_ref, g_ref, b_ref, w_ref, o_ref):
    x = x_ref[...]                                    # (tn, C) f32 residual stream
    mu = jnp.mean(x, axis=-1, keepdims=True)
    xc = x - mu
    var = jnp.mean(xc * xc, axis=-1, keepdims=True)   # biased variance (unbiased=False)
    y = xc * lax.rsqrt(var + 1e-5) * g_ref[...] + b_ref[...]
    o_ref[...] = jnp.dot(y.astype(jnp.bfloat16), w_ref[...],
                         preferred_element_type=jnp.float32).astype(o_ref.dtype)


def ln_matmul(x2d, gamma, beta, w_bf16, *, row_tile=512):
    N, C = x2d.shape
    M = w_bf16.shape[1]
    tn = _pick_row_tile(N, row_tile)
    # TODO(synk): pad M (3C / 2*hidden) to a multiple of 128 for lane-dense stores on
    # v5e when the Restormer dim is 48/96 (sub-128 last dims lower to masked vst.msk).
    return pl.pallas_call(
        _ln_matmul_kernel,
        out_shape=jax.ShapeDtypeStruct((N, M), jnp.bfloat16),
        grid=(N // tn,),
        in_specs=[pl.BlockSpec((tn, C), lambda i: (i, 0)),
                  pl.BlockSpec((1, C), lambda i: (0, 0)),
                  pl.BlockSpec((1, C), lambda i: (0, 0)),
                  pl.BlockSpec((C, M), lambda i: (0, 0))],
        out_specs=pl.BlockSpec((tn, M), lambda i: (i, 0)),
        compiler_params=pltpu.CompilerParams(
            dimension_semantics=("parallel",),
            vmem_limit_bytes=_VMEM_LIMIT),
    )(x2d, gamma.reshape(1, C), beta.reshape(1, C), w_bf16)


# ------------------------------------------------------------------
# Depthwise 3x3 conv, H-tiled with 8-row halo blocks, no jnp.pad pass
# ------------------------------------------------------------------

def _dwconv3x3_kernel(xc_ref, xt_ref, xb_ref, w_ref, o_ref, *, Th, W, hr):
    ih = pl.program_id(1)
    nh = pl.num_programs(1)
    xc = xc_ref[0].astype(jnp.float32)                     # (Th, W, tc)
    top = xt_ref[0][hr - 1:hr].astype(jnp.float32)         # (1, W, tc): row above tile
    bot = xb_ref[0][0:1].astype(jnp.float32)               # (1, W, tc): row below tile
    # zero-pad at the image's top / bottom edge
    top = top * jnp.where(ih > 0, 1.0, 0.0)
    bot = bot * jnp.where(ih < nh - 1, 1.0, 0.0)
    xe = jnp.concatenate([top, xc, bot], axis=0)           # (Th + 2, W, tc)
    w = w_ref[...].astype(jnp.float32)                     # (3, 3, tc)

    col = lax.broadcasted_iota(jnp.int32, (W, xc.shape[-1]), 0)
    mask_l = (col >= 1).astype(jnp.float32)                # zero image-left column
    mask_r = (col <= W - 2).astype(jnp.float32)            # zero image-right column

    acc = jnp.zeros(xc.shape, jnp.float32)
    for dy in range(3):
        vol = xe[dy:dy + Th]                               # cheap slice along major axis
        # dx taps via sublane rolls (XLU slot) instead of misaligned slices
        acc = acc + vol * w[dy, 1]
        acc = acc + pltpu.roll(vol, shift=1, axis=1) * mask_l * w[dy, 0]
        acc = acc + pltpu.roll(vol, shift=W - 1, axis=1) * mask_r * w[dy, 2]
    o_ref[0] = acc.astype(o_ref.dtype)


def dwconv3x3(x_nhwc, w33c, *, h_tile=64):
    B, H, W, C = x_nhwc.shape
    Th, hr = _pick_h_tile(H, h_tile)
    tc = _pick_channel_tile(C)
    nb = Th // hr                    # halo blocks (of hr rows) per output row-tile
    nhb = H // hr                    # total halo blocks along H
    kernel = functools.partial(_dwconv3x3_kernel, Th=Th, W=W, hr=hr)
    return pl.pallas_call(
        kernel,
        out_shape=jax.ShapeDtypeStruct((B, H, W, C), x_nhwc.dtype),
        grid=(B, H // Th, C // tc),
        in_specs=[
            pl.BlockSpec((1, Th, W, tc), lambda b, i, c: (b, i, 0, c)),
            # thin halo blocks: 8 rows just above / below the output tile (clamped)
            pl.BlockSpec((1, hr, W, tc),
                         lambda b, i, c: (b, jnp.maximum(i * nb - 1, 0), 0, c)),
            pl.BlockSpec((1, hr, W, tc),
                         lambda b, i, c: (b, jnp.minimum((i + 1) * nb, nhb - 1), 0, c)),
            pl.BlockSpec((3, 3, tc), lambda b, i, c: (0, 0, c)),
        ],
        out_specs=pl.BlockSpec((1, Th, W, tc), lambda b, i, c: (b, i, 0, c)),
        compiler_params=pltpu.CompilerParams(
            dimension_semantics=("parallel", "parallel", "parallel"),
            vmem_limit_bytes=_VMEM_LIMIT),
    )(x_nhwc, x_nhwc, x_nhwc, w33c)


# ------------------------------------------------------------------
# MDTA attention, L-blocked, with output projection + residual fused in
# ------------------------------------------------------------------

def _mdta_kernel(qkv_ref, temp_ref, wproj_ref, res_ref, o_ref,
                 attn_acc, q2_acc, k2_acc, m_scr, *, C, cp):
    ph = pl.program_id(1)
    lt = pl.program_id(2)
    nl = pl.num_programs(2)

    @pl.when(jnp.logical_and(ph == 0, lt == 0))
    def _init():
        attn_acc[...] = jnp.zeros_like(attn_acc)
        q2_acc[...] = jnp.zeros_like(q2_acc)
        k2_acc[...] = jnp.zeros_like(k2_acc)

    @pl.when(ph == 0)
    def _accumulate():
        # TODO(synk): store V separately so phase 1 does not re-read the full (Lt, 3C)
        # block (currently ~1.3x extra HBM reads of qkv on the attention path).
        x = qkv_ref[0]                                  # (Lt, 3C) bf16
        q = x[:, :C]
        k = x[:, C:2 * C]
        qf = q.astype(jnp.float32)
        kf = k.astype(jnp.float32)
        q2_acc[...] += jnp.sum(qf * qf, axis=0, keepdims=True)
        k2_acc[...] += jnp.sum(kf * kf, axis=0, keepdims=True)
        # Packed-head Gram matrix over the spatial axis: (C, C), bf16 MXU, f32 acc.
        attn_acc[...] += lax.dot_general(q, k, (((0,), (0,)), ((), ())),
                                         preferred_element_type=jnp.float32)

        @pl.when(lt == nl - 1)
        def _finalize():
            # F.normalize(dim=-1): x / max(||x||, 1e-12) == x * rsqrt(max(||x||^2, 1e-24))
            qinv = lax.rsqrt(jnp.maximum(q2_acc[...], 1e-24))      # (1, C)
            kinv = lax.rsqrt(jnp.maximum(k2_acc[...], 1e-24))      # (1, C)
            rs = qinv * temp_ref[...]                              # per-q-channel row scale
            ii = lax.broadcasted_iota(jnp.int32, (C, C), 0)
            jj = lax.broadcasted_iota(jnp.int32, (C, C), 1)
            # Row scaling via diag(rs) @ A (avoids a lane->sublane relayout of rs).
            diag_rs = jnp.where(ii == jj, 1.0, 0.0) * rs           # (C, C)
            a = attn_acc[...] * kinv                               # column scale
            a = lax.dot_general(diag_rs, a, (((1,), (0,)), ((), ())),
                                preferred_element_type=jnp.float32)
            # Block-diagonal head mask generated in-kernel; softmax over k-channels.
            head_mask = (ii // cp == jj // cp).astype(jnp.float32)
            a = a - jnp.max(a, axis=-1, keepdims=True)
            e = jnp.exp(a) * head_mask
            p = e / jnp.sum(e, axis=-1, keepdims=True)             # exact (PyTorch parity)
            # Fold the 1x1 output projection: out = V @ (P^T Wproj).
            m = lax.dot_general(p, wproj_ref[...].astype(jnp.float32),
                                (((0,), (0,)), ((), ())),
                                preferred_element_type=jnp.float32)
            m_scr[...] = m.astype(m_scr.dtype)

    @pl.when(ph == 1)
    def _emit():
        # TODO(synk): pack 2 batch elements per grid step to fill the 256x256 MXU
        # (v6e/v7x) when C < 256.
        v = qkv_ref[0][:, 2 * C:]                                  # (Lt, C) bf16
        out = jnp.dot(v, m_scr[...], preferred_element_type=jnp.float32)
        o_ref[0] = res_ref[0] + out                                # fused proj + residual


def mdta_attn_proj(qkv_blc, temperature, wproj_bf16, res_blc, num_heads, *, l_tile=1024):
    B, L, C3 = qkv_blc.shape
    C = C3 // 3
    cp = C // num_heads
    Lt = _pick_row_tile(L, l_tile)
    temp_c = jnp.repeat(temperature.reshape(-1), cp).reshape(1, C).astype(jnp.float32)
    kernel = functools.partial(_mdta_kernel, C=C, cp=cp)
    return pl.pallas_call(
        kernel,
        out_shape=jax.ShapeDtypeStruct((B, L, C), jnp.float32),
        grid=(B, 2, L // Lt),                       # (batch, phase, L tiles)
        in_specs=[
            pl.BlockSpec((1, Lt, C3), lambda b, ph, l: (b, l, 0)),
            pl.BlockSpec((1, C), lambda b, ph, l: (0, 0)),
            pl.BlockSpec((C, C), lambda b, ph, l: (0, 0)),
            pl.BlockSpec((1, Lt, C), lambda b, ph, l: (b, l * ph, 0)),
        ],
        out_specs=pl.BlockSpec((1, Lt, C), lambda b, ph, l: (b, l * ph, 0)),
        scratch_shapes=[
            pltpu.VMEM((C, C), jnp.float32),        # Gram-matrix accumulator
            pltpu.VMEM((1, C), jnp.float32),        # sum(q^2) over L
            pltpu.VMEM((1, C), jnp.float32),        # sum(k^2) over L
            pltpu.VMEM((C, C), jnp.bfloat16),       # folded softmax(P)^T @ Wproj
        ],
        compiler_params=pltpu.CompilerParams(
            dimension_semantics=("parallel", "arbitrary", "arbitrary"),
            vmem_limit_bytes=_VMEM_LIMIT),
    )(qkv_blc, temp_c, wproj_bf16, res_blc)


# ------------------------------------------------------------------
# GDFN gate (split, exact GELU, multiply) + 1x1 projection + residual, fused
# ------------------------------------------------------------------

def _gdfn_gate_proj_kernel(g_ref, w_ref, r_ref, o_ref, *, hidden):
    g = g_ref[...]                                   # (tn, 2*hidden) bf16
    x1 = g[:, :hidden].astype(jnp.float32)
    x2 = g[:, hidden:].astype(jnp.float32)
    gelu = 0.5 * x1 * (1.0 + lax.erf(x1 * (2.0 ** -0.5)))   # exact GELU (PyTorch default)
    h = (gelu * x2).astype(jnp.bfloat16)
    o_ref[...] = r_ref[...] + jnp.dot(h, w_ref[...],
                                      preferred_element_type=jnp.float32)


def gdfn_gate_proj(g, w_bf16, res, *, row_tile=512):
    N, H2 = g.shape
    hidden, C = w_bf16.shape
    tn = _pick_row_tile(N, row_tile)
    kernel = functools.partial(_gdfn_gate_proj_kernel, hidden=hidden)
    return pl.pallas_call(
        kernel,
        out_shape=jax.ShapeDtypeStruct((N, C), jnp.float32),
        grid=(N // tn,),
        in_specs=[pl.BlockSpec((tn, H2), lambda i: (i, 0)),
                  pl.BlockSpec((hidden, C), lambda i: (0, 0)),
                  pl.BlockSpec((tn, C), lambda i: (i, 0))],
        out_specs=pl.BlockSpec((tn, C), lambda i: (i, 0)),
        compiler_params=pltpu.CompilerParams(
            dimension_semantics=("parallel",),
            vmem_limit_bytes=_VMEM_LIMIT),
    )(g, w_bf16, res)


# ------------------------------------------------------------------
# MGDB forward (glue: boundary layout transposes / parameter plumbing only)
# ------------------------------------------------------------------

def init_params(key, dim, num_heads=4, ffn_expansion_factor=2.66):
    hidden = int(dim * ffn_expansion_factor)
    ks = jax.random.split(key, 6)
    s = 0.1
    bf = jnp.bfloat16
    return {
        "ln1_w": jnp.ones((dim,), jnp.float32),
        "ln1_b": jnp.zeros((dim,), jnp.float32),
        "qkv_w": (s * jax.random.normal(ks[0], (dim, 3 * dim), jnp.float32)).astype(bf),
        "qkv_dw_w": s * jax.random.normal(ks[1], (3, 3, 3 * dim), jnp.float32),
        "attn_temp": jnp.ones((num_heads,), jnp.float32),
        "attn_proj_w": (s * jax.random.normal(ks[2], (dim, dim), jnp.float32)).astype(bf),
        "ln2_w": jnp.ones((dim,), jnp.float32),
        "ln2_b": jnp.zeros((dim,), jnp.float32),
        "ffn_in_w": (s * jax.random.normal(ks[3], (dim, 2 * hidden), jnp.float32)).astype(bf),
        "ffn_dw_w": s * jax.random.normal(ks[4], (3, 3, 2 * hidden), jnp.float32),
        "ffn_out_w": (s * jax.random.normal(ks[5], (hidden, dim), jnp.float32)).astype(bf),
    }


def mgdb_forward(x_nchw, p, num_heads=4, row_tile=512):
    B, C, H, W = x_nchw.shape
    N = B * H * W
    L = H * W
    x = jnp.transpose(x_nchw, (0, 2, 3, 1)).astype(jnp.float32)    # NHWC (boundary only)
    x_flat = x.reshape(N, C)

    # ---- x = x + project_out(MDTA(dwconv(qkv(LN1(x))))) ----
    qkv = ln_matmul(x_flat, p["ln1_w"], p["ln1_b"], p["qkv_w"],
                    row_tile=row_tile)                              # (N, 3C) bf16
    qkv = dwconv3x3(qkv.reshape(B, H, W, 3 * C), p["qkv_dw_w"])     # bf16, no pad pass
    x_flat = mdta_attn_proj(qkv.reshape(B, L, 3 * C), p["attn_temp"],
                            p["attn_proj_w"], x_flat.reshape(B, L, C),
                            num_heads).reshape(N, C)                # f32 residual stream

    # ---- x = x + GDFN(LN2(x)) ----
    hid = p["ffn_out_w"].shape[0]
    g = ln_matmul(x_flat, p["ln2_w"], p["ln2_b"], p["ffn_in_w"],
                  row_tile=row_tile)                                # (N, 2*hid) bf16
    g = dwconv3x3(g.reshape(B, H, W, 2 * hid), p["ffn_dw_w"]).reshape(N, 2 * hid)
    x_flat = gdfn_gate_proj(g, p["ffn_out_w"], x_flat,
                            row_tile=row_tile)                      # gate + proj + residual

    return jnp.transpose(x_flat.reshape(B, H, W, C), (0, 3, 1, 2))  # back to NCHW


if __name__ == "__main__":
    dim, num_heads = 16, 4
    B, H, W = 2, 16, 16

    key = jax.random.PRNGKey(0)
    kx, kp = jax.random.split(key)
    x = jax.random.normal(kx, (B, dim, H, W), jnp.float32)          # NCHW input
    params = init_params(kp, dim, num_heads=num_heads)

    out = mgdb_forward(x, params, num_heads=num_heads)
    out = jax.block_until_ready(out)
    assert out.shape == (B, dim, H, W)
    assert bool(jnp.all(jnp.isfinite(out)))
    print("KERNEL_OK")
</pallas_src>

<mosaic_0001>
module attributes {stable_mosaic.version = 11 : i64} {
  func.func @_ln_matmul_kernel(%arg0: i32, %arg1: memref<512x16xf32, #tpu.memory_space<vmem>>, %arg2: memref<1x16xf32, #tpu.memory_space<vmem>>, %arg3: memref<1x16xf32, #tpu.memory_space<vmem>>, %arg4: memref<16x48xbf16, #tpu.memory_space<vmem>>, %arg5: memref<512x48xbf16, #tpu.memory_space<vmem>>) attributes {dimension_semantics = [#tpu.dimension_semantics<parallel>], iteration_bounds = array<i64: 1>, scalar_prefetch = 0 : i64, scratch_operands = 0 : i64, tpu.core_type = #tpu.core_type<tc>, window_params = [{transform_indices = @transform_0, window_bounds = array<i64: 512, 16>}, {pipeline_mode = #tpu.pipeline_mode<synchronous>, transform_indices = @transform_1, window_bounds = array<i64: 1, 16>}, {pipeline_mode = #tpu.pipeline_mode<synchronous>, transform_indices = @transform_2, window_bounds = array<i64: 1, 16>}, {pipeline_mode = #tpu.pipeline_mode<synchronous>, transform_indices = @transform_3, window_bounds = array<i64: 16, 48>}, {transform_indices = @transform_4, window_bounds = array<i64: 512, 48>}]} {
    %c0 = arith.constant 0 : index
    %c0_0 = arith.constant 0 : index
    %0 = vector.load %arg1[%c0, %c0_0] : memref<512x16xf32, #tpu.memory_space<vmem>>, vector<512x16xf32>
    %cst = arith.constant dense<0.000000e+00> : vector<512xf32>
    %1 = vector.multi_reduction <add>, %0, %cst [1] : vector<512x16xf32> to vector<512xf32>
    %2 = vector.shape_cast %1 : vector<512xf32> to vector<512x1xf32>
    %cst_1 = arith.constant 1.600000e+01 : f32
    %3 = vector.broadcast %cst_1 : f32 to vector<512x1xf32>
    %4 = arith.divf %2, %3 : vector<512x1xf32>
    %5 = vector.broadcast %4 : vector<512x1xf32> to vector<512x16xf32>
    %6 = arith.subf %0, %5 : vector<512x16xf32>
    %7 = arith.mulf %6, %6 : vector<512x16xf32>
    %cst_2 = arith.constant dense<0.000000e+00> : vector<512xf32>
    %8 = vector.multi_reduction <add>, %7, %cst_2 [1] : vector<512x16xf32> to vector<512xf32>
    %9 = vector.shape_cast %8 : vector<512xf32> to vector<512x1xf32>
    %cst_3 = arith.constant 1.600000e+01 : f32
    %10 = vector.broadcast %cst_3 : f32 to vector<512x1xf32>
    %11 = arith.divf %9, %10 : vector<512x1xf32>
    %cst_4 = arith.constant 9.99999974E-6 : f32
    %12 = vector.broadcast %cst_4 : f32 to vector<512x1xf32>
    %13 = arith.addf %11, %12 : vector<512x1xf32>
    %14 = math.rsqrt %13 : vector<512x1xf32>
    %15 = vector.broadcast %14 : vector<512x1xf32> to vector<512x16xf32>
    %16 = arith.mulf %6, %15 : vector<512x16xf32>
    %c0_5 = arith.constant 0 : index
    %c0_6 = arith.constant 0 : index
    %17 = vector.load %arg2[%c0_5, %c0_6] : memref<1x16xf32, #tpu.memory_space<vmem>>, vector<1x16xf32>
    %18 = vector.broadcast %17 : vector<1x16xf32> to vector<512x16xf32>
    %19 = arith.mulf %16, %18 : vector<512x16xf32>
    %c0_7 = arith.constant 0 : index
    %c0_8 = arith.constant 0 : index
    %20 = vector.load %arg3[%c0_7, %c0_8] : memref<1x16xf32, #tpu.memory_space<vmem>>, vector<1x16xf32>
    %21 = vector.broadcast %20 : vector<1x16xf32> to vector<512x16xf32>
    %22 = arith.addf %19, %21 : vector<512x16xf32>
    %23 = arith.truncf %22 : vector<512x16xf32> to vector<512x16xbf16>
    %c0_9 = arith.constant 0 : index
    %c0_10 = arith.constant 0 : index
    %24 = vector.load %arg4[%c0_9, %c0_10] : memref<16x48xbf16, #tpu.memory_space<vmem>>, vector<16x48xbf16>
    %cst_11 = arith.constant dense<0.000000e+00> : vector<512x48xf32>
    %25 = tpu.matmul %23, %24, %cst_11 {dimension_numbers = #tpu.dot_dimension_numbers<[1], [0], [0], [1], [0, 0, 1, 1], [], []>} : vector<512x16xbf16>, vector<16x48xbf16>, vector<512x48xf32> -> vector<512x48xf32>
    %26 = arith.truncf %25 : vector<512x48xf32> to vector<512x48xbf16>
    %c0_12 = arith.constant 0 : index
    %c0_13 = arith.constant 0 : index
    %27 = vector.load %arg5[%c0_12, %c0_13] : memref<512x48xbf16, #tpu.memory_space<vmem>>, vector<512x48xbf16>
    tpu.vector_store %arg5[%c0_12, %c0_13], %26 {strides = array<i32>} : memref<512x48xbf16, #tpu.memory_space<vmem>>, vector<512x48xbf16>,
    return
  }
  func.func @transform_0(%arg0: i32) -> (i32, i32) {
    %c0_i32 = arith.constant 0 : i32
    %c0_i32_0 = arith.constant 0 : i32
    return %arg0, %c0_i32 : i32, i32
  }
  func.func @transform_1(%arg0: i32) -> (i32, i32) {
    %c0_i32 = arith.constant 0 : i32
    %c0_i32_0 = arith.constant 0 : i32
    %c0_i32_1 = arith.constant 0 : i32
    return %c0_i32, %c0_i32_0 : i32, i32
  }
  func.func @transform_2(%arg0: i32) -> (i32, i32) {
    %c0_i32 = arith.constant 0 : i32
    %c0_i32_0 = arith.constant 0 : i32
    %c0_i32_1 = arith.constant 0 : i32
    return %c0_i32, %c0_i32_0 : i32, i32
  }
  func.func @transform_3(%arg0: i32) -> (i32, i32) {
    %c0_i32 = arith.constant 0 : i32
    %c0_i32_0 = arith.constant 0 : i32
    %c0_i32_1 = arith.constant 0 : i32
    return %c0_i32, %c0_i32_0 : i32, i32
  }
  func.func @transform_4(%arg0: i32) -> (i32, i32) {
    %c0_i32 = arith.constant 0 : i32
    %c0_i32_0 = arith.constant 0 : i32
    return %arg0, %c0_i32 : i32, i32
  }
}

</mosaic_0001>

<llo_original>
// kernel: tpu_custom_call.1
$region0: #{tpu_custom_call.1}
  #allocation0 [shape = 'u32[]', space=smem, size = 0x4, offset = 0x4, fixed_abs, tag = 'smem constant byte address 0x4 - core index']
  #allocation1 [shape = 'u32[144,128]{1,0:T(1,128)}', space=vmem, size = 0x12000, scoped, tag = 'internal scratch']
  %s0 = inlined_call_operand.vmem [shape: f32[512,16], index: 0, kind: input, shape index: {}]
  %s1 = inlined_call_operand.vmem [shape: f32[1,16], index: 1, kind: input, shape index: {}]
  %s2 = inlined_call_operand.vmem [shape: f32[1,16], index: 2, kind: input, shape index: {}]
  %s3 = inlined_call_operand.vmem [shape: bf16[16,48], index: 3, kind: input, shape index: {}]
  %s4 = inlined_call_operand.vmem [shape: bf16[512,48], index: 4, kind: output, shape index: {}]
  %s5 = sld [smem:[#allocation0]]
  $region26: #{tpu_custom_call.1} parent=0
    _
  %s7 = ssub.s32 1, %s5
  %s8 = scalar_select 0, %s7, %s5
  // Predicated region
  $region2: #{tpu_custom_call.1} parent=0 // pred_check
    _
  $region3: #{tpu_custom_call.1} parent=0 // pred_check_branch
    %10 = sbr.rel (0) target = $region5
  $region4: #{tpu_custom_call.1} parent=0 // pred_region
    _
  $region5: #{tpu_custom_call.1} parent=0 // pred_fallthru
    _
  // Predicated region
  $region6: #{tpu_custom_call.1} parent=0 // pred_check
    _
  $region7: #{tpu_custom_call.1} parent=0 // pred_check_branch
    %12 = sbr.rel (0) target = $region9
  $region8: #{tpu_custom_call.1} parent=0 // pred_region
    _
  $region9: #{tpu_custom_call.1} parent=0 // pred_fallthru
    _
  // Predicated region
  $region10: #{tpu_custom_call.1} parent=0 // pred_check
    _
  $region11: #{tpu_custom_call.1} parent=0 // pred_check_branch
    %14 = sbr.rel (0) target = $region13
  $region12: #{tpu_custom_call.1} parent=0 // pred_region
    _
  $region13: #{tpu_custom_call.1} parent=0 // pred_fallthru
    _
  // Predicated region
  $region14: #{tpu_custom_call.1} parent=0 // pred_check
    _
  $region15: #{tpu_custom_call.1} parent=0 // pred_check_branch
    %16 = sbr.rel (0) target = $region17
  $region16: #{tpu_custom_call.1} parent=0 // pred_region
    _
  $region17: #{tpu_custom_call.1} parent=0 // pred_fallthru
    _
  %v18 = vld [vmem:[%s0] sm:$0xff]
  %v19 = vld [vmem:[%s0 + $0x8] sm:$0xff]
  %v20 = vld [vmem:[%s0 + $0x10] sm:$0xff]
  %v21 = vld [vmem:[%s0 + $0x18] sm:$0xff]
  %v22 = vld [vmem:[%s0 + $0x20] sm:$0xff]
  %v23 = vld [vmem:[%s0 + $0x28] sm:$0xff]
  %v24 = vld [vmem:[%s0 + $0x30] sm:$0xff]
  %v25 = vld [vmem:[%s0 + $0x38] sm:$0xff]
  %v26 = vld [vmem:[%s0 + $0x40] sm:$0xff]
  %v27 = vld [vmem:[%s0 + $0x48] sm:$0xff]
  %v28 = vld [vmem:[%s0 + $0x50] sm:$0xff]
  %v29 = vld [vmem:[%s0 + $0x58] sm:$0xff]
  %v30 = vld [vmem:[%s0 + $0x60] sm:$0xff]
  %v31 = vld [vmem:[%s0 + $0x68] sm:$0xff]
  %v32 = vld [vmem:[%s0 + $0x70] sm:$0xff]
  %v33 = vld [vmem:[%s0 + $0x78] sm:$0xff]
  %v34 = vld [vmem:[%s0 + $0x80] sm:$0xff]
  %v35 = vld [vmem:[%s0 + $0x88] sm:$0xff]
  %v36 = vld [vmem:[%s0 + $0x90] sm:$0xff]
  %v37 = vld [vmem:[%s0 + $0x98] sm:$0xff]
  %v38 = vld [vmem:[%s0 + $0xa0] sm:$0xff]
  %v39 = vld [vmem:[%s0 + $0xa8] sm:$0xff]
  %v40 = vld [vmem:[%s0 + $0xb0] sm:$0xff]
  %v41 = vld [vmem:[%s0 + $0xb8] sm:$0xff]
  %v42 = vld [vmem:[%s0 + $0xc0] sm:$0xff]
  %v43 = vld [vmem:[%s0 + $0xc8] sm:$0xff]
  %v44 = vld [vmem:[%s0 + $0xd0] sm:$0xff]
  %v45 = vld [vmem:[%s0 + $0xd8] sm:$0xff]
  %v46 = vld [vmem:[%s0 + $0xe0] sm:$0xff]
  %v47 = vld [vmem:[%s0 + $0xe8] sm:$0xff]
  %v48 = vld [vmem:[%s0 + $0xf0] sm:$0xff]
  %v49 = vld [vmem:[%s0 + $0xf8] sm:$0xff]
  %v50 = vld [vmem:[%s0 + $0x100] sm:$0xff]
  %v51 = vld [vmem:[%s0 + $0x108] sm:$0xff]
  %v52 = vld [vmem:[%s0 + $0x110] sm:$0xff]
  %v53 = vld [vmem:[%s0 + $0x118] sm:$0xff]
  %v54 = vld [vmem:[%s0 + $0x120] sm:$0xff]
  %v55 = vld [vmem:[%s0 + $0x128] sm:$0xff]
  %v56 = vld [vmem:[%s0 + $0x130] sm:$0xff]
  %v57 = vld [vmem:[%s0 + $0x138] sm:$0xff]
  %v58 = vld [vmem:[%s0 + $0x140] sm:$0xff]
  %v59 = vld [vmem:[%s0 + $0x148] sm:$0xff]
  %v60 = vld [vmem:[%s0 + $0x150] sm:$0xff]
  %v61 = vld [vmem:[%s0 + $0x158] sm:$0xff]
  %v62 = vld [vmem:[%s0 + $0x160] sm:$0xff]
  %v63 = vld [vmem:[%s0 + $0x168] sm:$0xff]
  %v64 = vld [vmem:[%s0 + $0x170] sm:$0xff]
  %v65 = vld [vmem:[%s0 + $0x178] sm:$0xff]
  %v66 = vld [vmem:[%s0 + $0x180] sm:$0xff]
  %v67 = vld [vmem:[%s0 + $0x188] sm:$0xff]
  %v68 = vld [vmem:[%s0 + $0x190] sm:$0xff]
  %v69 = vld [vmem:[%s0 + $0x198] sm:$0xff]
  %v70 = vld [vmem:[%s0 + $0x1a0] sm:$0xff]
  %v71 = vld [vmem:[%s0 + $0x1a8] sm:$0xff]
  %v72 = vld [vmem:[%s0 + $0x1b0] sm:$0xff]
  %v73 = vld [vmem:[%s0 + $0x1b8] sm:$0xff]
  %v74 = vld [vmem:[%s0 + $0x1c0] sm:$0xff]
  %v75 = vld [vmem:[%s0 + $0x1c8] sm:$0xff]
  %v76 = vld [vmem:[%s0 + $0x1d0] sm:$0xff]
  %v77 = vld [vmem:[%s0 + $0x1d8] sm:$0xff]
  %v78 = vld [vmem:[%s0 + $0x1e0] sm:$0xff]
  %v79 = vld [vmem:[%s0 + $0x1e8] sm:$0xff]
  %v80 = vld [vmem:[%s0 + $0x1f0] sm:$0xff]
  %v81 = vld [vmem:[%s0 + $0x1f8] sm:$0xff]
  %vm82 = vcmask 130048
  %v83 = vsel %vm82, %v18, 0.0
  %84 = vadd.xlane.f32.xlu0 %v83
  %v85 = vpop.xlane.xlu0 %84
  %v86 = vsel %vm82, %v19, 0.0
  %87 = vadd.xlane.f32.xlu0 %v86
  %v88 = vpop.xlane.xlu0 %87
  %v89 = vsel %vm82, %v20, 0.0
  %90 = vadd.xlane.f32.xlu0 %v89
  %v91 = vpop.xlane.xlu0 %90
  %v92 = vsel %vm82, %v21, 0.0
  %93 = vadd.xlane.f32.xlu0 %v92
  %v94 = vpop.xlane.xlu0 %93
  %v95 = vsel %vm82, %v22, 0.0
  %96 = vadd.xlane.f32.xlu0 %v95
  %v97 = vpop.xlane.xlu0 %96
  %v98 = vsel %vm82, %v23, 0.0
  %99 = vadd.xlane.f32.xlu0 %v98
  %v100 = vpop.xlane.xlu0 %99
  %v101 = vsel %vm82, %v24, 0.0
  %102 = vadd.xlane.f32.xlu0 %v101
  %v103 = vpop.xlane.xlu0 %102
  %v104 = vsel %vm82, %v25, 0.0
  %105 = vadd.xlane.f32.xlu0 %v104
  %v106 = vpop.xlane.xlu0 %105
  %v107 = vsel %vm82, %v26, 0.0
  %108 = vadd.xlane.f32.xlu0 %v107
  %v109 = vpop.xlane.xlu0 %108
  %v110 = vsel %vm82, %v27, 0.0
  %111 = vadd.xlane.f32.xlu0 %v110
  %v112 = vpop.xlane.xlu0 %111
  %v113 = vsel %vm82, %v28, 0.0
  %114 = vadd.xlane.f32.xlu0 %v113
  %v115 = vpop.xlane.xlu0 %114
  %v116 = vsel %vm82, %v29, 0.0
  %117 = vadd.xlane.f32.xlu0 %v116
  %v118 = vpop.xlane.xlu0 %117
  %v119 = vsel %vm82, %v30, 0.0
  %120 = vadd.xlane.f32.xlu0 %v119
  %v121 = vpop.xlane.xlu0 %120
  %v122 = vsel %vm82, %v31, 0.0
  %123 = vadd.xlane.f32.xlu0 %v122
  %v124 = vpop.xlane.xlu0 %123
  %v125 = vsel %vm82, %v32, 0.0
  %126 = vadd.xlane.f32.xlu0 %v125
  %v127 = vpop.xlane.xlu0 %126
  %v128 = vsel %vm82, %v33, 0.0
  %129 = vadd.xlane.f32.xlu0 %v128
  %v130 = vpop.xlane.xlu0 %129
  %v131 = vsel %vm82, %v34, 0.0
  %132 = vadd.xlane.f32.xlu0 %v131
  %v133 = vpop.xlane.xlu0 %132
  %v134 = vsel %vm82, %v35, 0.0
  %135 = vadd.xlane.f32.xlu0 %v134
  %v136 = vpop.xlane.xlu0 %135
  %v137 = vsel %vm82, %v36, 0.0
  %138 = vadd.xlane.f32.xlu0 %v137
  %v139 = vpop.xlane.xlu0 %138
  %v140 = vsel %vm82, %v37, 0.0
  %141 = vadd.xlane.f32.xlu0 %v140
  %v142 = vpop.xlane.xlu0 %141
  %v143 = vsel %vm82, %v38, 0.0
  %144 = vadd.xlane.f32.xlu0 %v143
  %v145 = vpop.xlane.xlu0 %144
  %v146 = vsel %vm82, %v39, 0.0
  %147 = vadd.xlane.f32.xlu0 %v146
  %v148 = vpop.xlane.xlu0 %147
  %v149 = vsel %vm82, %v40, 0.0
  %150 = vadd.xlane.f32.xlu0 %v149
  %v151 = vpop.xlane.xlu0 %150
  %v152 = vsel %vm82, %v41, 0.0
  %153 = vadd.xlane.f32.xlu0 %v152
  %v154 = vpop.xlane.xlu0 %153
  %v155 = vsel %vm82, %v42, 0.0
  %156 = vadd.xlane.f32.xlu0 %v155
  %v157 = vpop.xlane.xlu0 %156
  %v158 = vsel %vm82, %v43, 0.0
  %159 = vadd.xlane.f32.xlu0 %v158
  %v160 = vpop.xlane.xlu0 %159
  %v161 = vsel %vm82, %v44, 0.0
  %162 = vadd.xlane.f32.xlu0 %v161
  %v163 = vpop.xlane.xlu0 %162
  %v164 = vsel %vm82, %v45, 0.0
  %165 = vadd.xlane.f32.xlu0 %v164
  %v166 = vpop.xlane.xlu0 %165
  %v167 = vsel %vm82, %v46, 0.0
  %168 = vadd.xlane.f32.xlu0 %v167
  %v169 = vpop.xlane.xlu0 %168
  %v170 = vsel %vm82, %v47, 0.0
  %171 = vadd.xlane.f32.xlu0 %v170
  %v172 = vpop.xlane.xlu0 %171
  %v173 = vsel %vm82, %v48, 0.0
  %174 = vadd.xlane.f32.xlu0 %v173
  %v175 = vpop.xlane.xlu0 %174
  %v176 = vsel %vm82, %v49, 0.0
  %177 = vadd.xlane.f32.xlu0 %v176
  %v178 = vpop.xlane.xlu0 %177
  %v179 = vsel %vm82, %v50, 0.0
  %180 = vadd.xlane.f32.xlu0 %v179
  %v181 = vpop.xlane.xlu0 %180
  %v182 = vsel %vm82, %v51, 0.0
  %183 = vadd.xlane.f32.xlu0 %v182
  %v184 = vpop.xlane.xlu0 %183
  %v185 = vsel %vm82, %v52, 0.0
  %186 = vadd.xlane.f32.xlu0 %v185
  %v187 = vpop.xlane.xlu0 %186
  %v188 = vsel %vm82, %v53, 0.0
  %189 = vadd.xlane.f32.xlu0 %v188
  %v190 = vpop.xlane.xlu0 %189
  %v191 = vsel %vm82, %v54, 0.0
  %192 = vadd.xlane.f32.xlu0 %v191
  %v193 = vpop.xlane.xlu0 %192
  %v194 = vsel %vm82, %v55, 0.0
  %195 = vadd.xlane.f32.xlu0 %v194
  %v196 = vpop.xlane.xlu0 %195
  %v197 = vsel %vm82, %v56, 0.0
  %198 = vadd.xlane.f32.xlu0 %v197
  %v199 = vpop.xlane.xlu0 %198
  %v200 = vsel %vm82, %v57, 0.0
  %201 = vadd.xlane.f32.xlu0 %v200
  %v202 = vpop.xlane.xlu0 %201
  %v203 = vsel %vm82, %v58, 0.0
  %204 = vadd.xlane.f32.xlu0 %v203
  %v205 = vpop.xlane.xlu0 %204
  %v206 = vsel %vm82, %v59, 0.0
  %207 = vadd.xlane.f32.xlu0 %v206
  %v208 = vpop.xlane.xlu0 %207
  %v209 = vsel %vm82, %v60, 0.0
  %210 = vadd.xlane.f32.xlu0 %v209
  %v211 = vpop.xlane.xlu0 %210
  %v212 = vsel %vm82, %v61, 0.0
  %213 = vadd.xlane.f32.xlu0 %v212
  %v214 = vpop.xlane.xlu0 %213
  %v215 = vsel %vm82, %v62, 0.0
  %216 = vadd.xlane.f32.xlu0 %v215
  %v217 = vpop.xlane.xlu0 %216
  %v218 = vsel %vm82, %v63, 0.0
  %219 = vadd.xlane.f32.xlu0 %v218
  %v220 = vpop.xlane.xlu0 %219
  %v221 = vsel %vm82, %v64, 0.0
  %222 = vadd.xlane.f32.xlu0 %v221
  %v223 = vpop.xlane.xlu0 %222
  %v224 = vsel %vm82, %v65, 0.0
  %225 = vadd.xlane.f32.xlu0 %v224
  %v226 = vpop.xlane.xlu0 %225
  %v227 = vsel %vm82, %v66, 0.0
  %228 = vadd.xlane.f32.xlu0 %v227
  %v229 = vpop.xlane.xlu0 %228
  %v230 = vsel %vm82, %v67, 0.0
  %231 = vadd.xlane.f32.xlu0 %v230
  %v232 = vpop.xlane.xlu0 %231
  %v233 = vsel %vm82, %v68, 0.0
  %234 = vadd.xlane.f32.xlu0 %v233
  %v235 = vpop.xlane.xlu0 %234
  %v236 = vsel %vm82, %v69, 0.0
  %237 = vadd.xlane.f32.xlu0 %v236
  %v238 = vpop.xlane.xlu0 %237
  %v239 = vsel %vm82, %v70, 0.0
  %240 = vadd.xlane.f32.xlu0 %v239
  %v241 = vpop.xlane.xlu0 %240
  %v242 = vsel %vm82, %v71, 0.0
  %243 = vadd.xlane.f32.xlu0 %v242
  %v244 = vpop.xlane.xlu0 %243
  %v245 = vsel %vm82, %v72, 0.0
  %246 = vadd.xlane.f32.xlu0 %v245
  %v247 = vpop.xlane.xlu0 %246
  %v248 = vsel %vm82, %v73, 0.0
  %249 = vadd.xlane.f32.xlu0 %v248
  %v250 = vpop.xlane.xlu0 %249
  %v251 = vsel %vm82, %v74, 0.0
  %252 = vadd.xlane.f32.xlu0 %v251
  %v253 = vpop.xlane.xlu0 %252
  %v254 = vsel %vm82, %v75, 0.0
  %255 = vadd.xlane.f32.xlu0 %v254
  %v256 = vpop.xlane.xlu0 %255
  %v257 = vsel %vm82, %v76, 0.0
  %258 = vadd.xlane.f32.xlu0 %v257
  %v259 = vpop.xlane.xlu0 %258
  %v260 = vsel %vm82, %v77, 0.0
  %261 = vadd.xlane.f32.xlu0 %v260
  %v262 = vpop.xlane.xlu0 %261
  %v263 = vsel %vm82, %v78, 0.0
  %264 = vadd.xlane.f32.xlu0 %v263
  %v265 = vpop.xlane.xlu0 %264
  %v266 = vsel %vm82, %v79, 0.0
  %267 = vadd.xlane.f32.xlu0 %v266
  %v268 = vpop.xlane.xlu0 %267
  %v269 = vsel %vm82, %v80, 0.0
  %270 = vadd.xlane.f32.xlu0 %v269
  %v271 = vpop.xlane.xlu0 %270
  %v272 = vsel %vm82, %v81, 0.0
  %273 = vadd.xlane.f32.xlu0 %v272
  %v274 = vpop.xlane.xlu0 %273
  %v275 = vrcp.pop 16.0
  %v276 = vmul.f32 %v85, %v275
  %v277 = vmul.f32 %v88, %v275
  %v278 = vmul.f32 %v91, %v275
  %v279 = vmul.f32 %v94, %v275
  %v280 = vmul.f32 %v97, %v275
  %v281 = vmul.f32 %v100, %v275
  %v282 = vmul.f32 %v103, %v275
  %v283 = vmul.f32 %v106, %v275
  %v284 = vmul.f32 %v109, %v275
  %v285 = vmul.f32 %v112, %v275
  %v286 = vmul.f32 %v115, %v275
  %v287 = vmul.f32 %v118, %v275
  %v288 = vmul.f32 %v121, %v275
  %v289 = vmul.f32 %v124, %v275
  %v290 = vmul.f32 %v127, %v275
  %v291 = vmul.f32 %v130, %v275
  %v292 = vmul.f32 %v133, %v275
  %v293 = vmul.f32 %v136, %v275
  %v294 = vmul.f32 %v139, %v275
  %v295 = vmul.f32 %v142, %v275
  %v296 = vmul.f32 %v145, %v275
  %v297 = vmul.f32 %v148, %v275
  %v298 = vmul.f32 %v151, %v275
  %v299 = vmul.f32 %v154, %v275
  %v300 = vmul.f32 %v157, %v275
  %v301 = vmul.f32 %v160, %v275
  %v302 = vmul.f32 %v163, %v275
  %v303 = vmul.f32 %v166, %v275
  %v304 = vmul.f32 %v169, %v275
  %v305 = vmul.f32 %v172, %v275
  %v306 = vmul.f32 %v175, %v275
  %v307 = vmul.f32 %v178, %v275
  %v308 = vmul.f32 %v181, %v275
  %v309 = vmul.f32 %v184, %v275
  %v310 = vmul.f32 %v187, %v275
  %v311 = vmul.f32 %v190, %v275
  %v312 = vmul.f32 %v193, %v275
  %v313 = vmul.f32 %v196, %v275
  %v314 = vmul.f32 %v199, %v275
  %v315 = vmul.f32 %v202, %v275
  %v316 = vmul.f32 %v205, %v275
  %v317 = vmul.f32 %v208, %v275
  %v318 = vmul.f32 %v211, %v275
  %v319 = vmul.f32 %v214, %v275
  %v320 = vmul.f32 %v217, %v275
  %v321 = vmul.f32 %v220, %v275
  %v322 = vmul.f32 %v223, %v275
  %v323 = vmul.f32 %v226, %v275
  %v324 = vmul.f32 %v229, %v275
  %v325 = vmul.f32 %v232, %v275
  %v326 = vmul.f32 %v235, %v275
  %v327 = vmul.f32 %v238, %v275
  %v328 = vmul.f32 %v241, %v275
  %v329 = vmul.f32 %v244, %v275
  %v330 = vmul.f32 %v247, %v275
  %v331 = vmul.f32 %v250, %v275
  %v332 = vmul.f32 %v253, %v275
  %v333 = vmul.f32 %v256, %v275
  %v334 = vmul.f32 %v259, %v275
  %v335 = vmul.f32 %v262, %v275
  %v336 = vmul.f32 %v265, %v275
  %v337 = vmul.f32 %v268, %v275
  %v338 = vmul.f32 %v271, %v275
  %v339 = vmul.f32 %v274, %v275
  %v340 = vsub.f32 %v18, %v276
  %v341 = vsub.f32 %v19, %v277
  %v342 = vsub.f32 %v20, %v278
  %v343 = vsub.f32 %v21, %v279
  %v344 = vsub.f32 %v22, %v280
  %v345 = vsub.f32 %v23, %v281
  %v346 = vsub.f32 %v24, %v282
  %v347 = vsub.f32 %v25, %v283
  %v348 = vsub.f32 %v26, %v284
  %v349 = vsub.f32 %v27, %v285
  %v350 = vsub.f32 %v28, %v286
  %v351 = vsub.f32 %v29, %v287
  %v352 = vsub.f32 %v30, %v288
  %v353 = vsub.f32 %v31, %v289
  %v354 = vsub.f32 %v32, %v290
  %v355 = vsub.f32 %v33, %v291
  %v356 = vsub.f32 %v34, %v292
  %v357 = vsub.f32 %v35, %v293
  %v358 = vsub.f32 %v36, %v294
  %v359 = vsub.f32 %v37, %v295
  %v360 = vsub.f32 %v38, %v296
  %v361 = vsub.f32 %v39, %v297
  %v362 = vsub.f32 %v40, %v298
  %v363 = vsub.f32 %v41, %v299
  %v364 = vsub.f32 %v42, %v300
  %v365 = vsub.f32 %v43, %v301
  %v366 = vsub.f32 %v44, %v302
  %v367 = vsub.f32 %v45, %v303
  %v368 = vsub.f32 %v46, %v304
  %v369 = vsub.f32 %v47, %v305
  %v370 = vsub.f32 %v48, %v306
  %v371 = vsub.f32 %v49, %v307
  %v372 = vsub.f32 %v50, %v308
  %v373 = vsub.f32 %v51, %v309
  %v374 = vsub.f32 %v52, %v310
  %v375 = vsub.f32 %v53, %v311
  %v376 = vsub.f32 %v54, %v312
  %v377 = vsub.f32 %v55, %v313
  %v378 = vsub.f32 %v56, %v314
  %v379 = vsub.f32 %v57, %v315
  %v380 = vsub.f32 %v58, %v316
  %v381 = vsub.f32 %v59, %v317
  %v382 = vsub.f32 %v60, %v318
  %v383 = vsub.f32 %v61, %v319
  %v384 = vsub.f32 %v62, %v320
  %v385 = vsub.f32 %v63, %v321
  %v386 = vsub.f32 %v64, %v322
  %v387 = vsub.f32 %v65, %v323
  %v388 = vsub.f32 %v66, %v324
  %v389 = vsub.f32 %v67, %v325
  %v390 = vsub.f32 %v68, %v326
  %v391 = vsub.f32 %v69, %v327
  %v392 = vsub.f32 %v70, %v328
  %v393 = vsub.f32 %v71, %v329
  %v394 = vsub.f32 %v72, %v330
  %v395 = vsub.f32 %v73, %v331
  %v396 = vsub.f32 %v74, %v332
  %v397 = vsub.f32 %v75, %v333
  %v398 = vsub.f32 %v76, %v334
  %v399 = vsub.f32 %v77, %v335
  %v400 = vsub.f32 %v78, %v336
  %v401 = vsub.f32 %v79, %v337
  %v402 = vsub.f32 %v80, %v338
  %v403 = vsub.f32 %v81, %v339
  %v404 = vmul.f32 %v340, %v340
  %v405 = vmul.f32 %v341, %v341
  %v406 = vmul.f32 %v342, %v342
  %v407 = vmul.f32 %v343, %v343
  %v408 = vmul.f32 %v344, %v344
  %v409 = vmul.f32 %v345, %v345
  %v410 = vmul.f32 %v346, %v346
  %v411 = vmul.f32 %v347, %v347
  %v412 = vmul.f32 %v348, %v348
  %v413 = vmul.f32 %v349, %v349
  %v414 = vmul.f32 %v350, %v350
  %v415 = vmul.f32 %v351, %v351
  %v416 = vmul.f32 %v352, %v352
  %v417 = vmul.f32 %v353, %v353
  %v418 = vmul.f32 %v354, %v354
  %v419 = vmul.f32 %v355, %v355
  %v420 = vmul.f32 %v356, %v356
  %v421 = vmul.f32 %v357, %v357
  %v422 = vmul.f32 %v358, %v358
  %v423 = vmul.f32 %v359, %v359
  %v424 = vmul.f32 %v360, %v360
  %v425 = vmul.f32 %v361, %v361
  %v426 = vmul.f32 %v362, %v362
  %v427 = vmul.f32 %v363, %v363
  %v428 = vmul.f32 %v364, %v364
  %v429 = vmul.f32 %v365, %v365
  %v430 = vmul.f32 %v366, %v366
  %v431 = vmul.f32 %v367, %v367
  %v432 = vmul.f32 %v368, %v368
  %v433 = vmul.f32 %v369, %v369
  %v434 = vmul.f32 %v370, %v370
  %v435 = vmul.f32 %v371, %v371
  %v436 = vmul.f32 %v372, %v372
  %v437 = vmul.f32 %v373, %v373
  %v438 = vmul.f32 %v374, %v374
  %v439 = vmul.f32 %v375, %v375
  %v440 = vmul.f32 %v376, %v376
  %v441 = vmul.f32 %v377, %v377
  %v442 = vmul.f32 %v378, %v378
  %v443 = vmul.f32 %v379, %v379
  %v444 = vmul.f32 %v380, %v380
  %v445 = vmul.f32 %v381, %v381
  %v446 = vmul.f32 %v382, %v382
  %v447 = vmul.f32 %v383, %v383
  %v448 = vmul.f32 %v384, %v384
  %v449 = vmul.f32 %v385, %v385
  %v450 = vmul.f32 %v386, %v386
  %v451 = vmul.f32 %v387, %v387
  %v452 = vmul.f32 %v388, %v388
  %v453 = vmul.f32 %v389, %v389
  %v454 = vmul.f32 %v390, %v390
  %v455 = vmul.f32 %v391, %v391
  %v456 = vmul.f32 %v392, %v392
  %v457 = vmul.f32 %v393, %v393
  %v458 = vmul.f32 %v394, %v394
  %v459 = vmul.f32 %v395, %v395
  %v460 = vmul.f32 %v396, %v396
  %v461 = vmul.f32 %v397, %v397
  %v462 = vmul.f32 %v398, %v398
  %v463 = vmul.f32 %v399, %v399
  %v464 = vmul.f32 %v400, %v400
  %v465 = vmul.f32 %v401, %v401
  %v466 = vmul.f32 %v402, %v402
  %v467 = vmul.f32 %v403, %v403
  %v468 = vsel %vm82, %v404, 0.0
  %469 = vadd.xlane.f32.xlu0 %v468
  %v470 = vpop.xlane.xlu0 %469
  %v471 = vsel %vm82, %v405, 0.0
  %472 = vadd.xlane.f32.xlu0 %v471
  %v473 = vpop.xlane.xlu0 %472
  %v474 = vsel %vm82, %v406, 0.0
  %475 = vadd.xlane.f32.xlu0 %v474
  %v476 = vpop.xlane.xlu0 %475
  %v477 = vsel %vm82, %v407, 0.0
  %478 = vadd.xlane.f32.xlu0 %v477
  %v479 = vpop.xlane.xlu0 %478
  %v480 = vsel %vm82, %v408, 0.0
  %481 = vadd.xlane.f32.xlu0 %v480
  %v482 = vpop.xlane.xlu0 %481
  %v483 = vsel %vm82, %v409, 0.0
  %484 = vadd.xlane.f32.xlu0 %v483
  %v485 = vpop.xlane.xlu0 %484
  %v486 = vsel %vm82, %v410, 0.0
  %487 = vadd.xlane.f32.xlu0 %v486
  %v488 = vpop.xlane.xlu0 %487
  %v489 = vsel %vm82, %v411, 0.0
  %490 = vadd.xlane.f32.xlu0 %v489
  %v491 = vpop.xlane.xlu0 %490
  %v492 = vsel %vm82, %v412, 0.0
  %493 = vadd.xlane.f32.xlu0 %v492
  %v494 = vpop.xlane.xlu0 %493
  %v495 = vsel %vm82, %v413, 0.0
  %496 = vadd.xlane.f32.xlu0 %v495
  %v497 = vpop.xlane.xlu0 %496
  %v498 = vsel %vm82, %v414, 0.0
  %499 = vadd.xlane.f32.xlu0 %v498
  %v500 = vpop.xlane.xlu0 %499
  %v501 = vsel %vm82, %v415, 0.0
  %502 = vadd.xlane.f32.xlu0 %v501
  %v503 = vpop.xlane.xlu0 %502
  %v504 = vsel %vm82, %v416, 0.0
  %505 = vadd.xlane.f32.xlu0 %v504
  %v506 = vpop.xlane.xlu0 %505
  %v507 = vsel %vm82, %v417, 0.0
  %508 = vadd.xlane.f32.xlu0 %v507
  %v509 = vpop.xlane.xlu0 %508
  %v510 = vsel %vm82, %v418, 0.0
  %511 = vadd.xlane.f32.xlu0 %v510
  %v512 = vpop.xlane.xlu0 %511
  %v513 = vsel %vm82, %v419, 0.0
  %514 = vadd.xlane.f32.xlu0 %v513
  %v515 = vpop.xlane.xlu0 %514
  %v516 = vsel %vm82, %v420, 0.0
  %517 = vadd.xlane.f32.xlu0 %v516
  %v518 = vpop.xlane.xlu0 %517
  %v519 = vsel %vm82, %v421, 0.0
  %520 = vadd.xlane.f32.xlu0 %v519
  %v521 = vpop.xlane.xlu0 %520
  %v522 = vsel %vm82, %v422, 0.0
  %523 = vadd.xlane.f32.xlu0 %v522
  %v524 = vpop.xlane.xlu0 %523
  %v525 = vsel %vm82, %v423, 0.0
  %526 = vadd.xlane.f32.xlu0 %v525
  %v527 = vpop.xlane.xlu0 %526
  %v528 = vsel %vm82, %v424, 0.0
  %529 = vadd.xlane.f32.xlu0 %v528
  %v530 = vpop.xlane.xlu0 %529
  %v531 = vsel %vm82, %v425, 0.0
  %532 = vadd.xlane.f32.xlu0 %v531
  %v533 = vpop.xlane.xlu0 %532
  %v534 = vsel %vm82, %v426, 0.0
  %535 = vadd.xlane.f32.xlu0 %v534
  %v536 = vpop.xlane.xlu0 %535
  %v537 = vsel %vm82, %v427, 0.0
  %538 = vadd.xlane.f32.xlu0 %v537
  %v539 = vpop.xlane.xlu0 %538
  %v540 = vsel %vm82, %v428, 0.0
  %541 = vadd.xlane.f32.xlu0 %v540
  %v542 = vpop.xlane.xlu0 %541
  %v543 = vsel %vm82, %v429, 0.0
  %544 = vadd.xlane.f32.xlu0 %v543
  %v545 = vpop.xlane.xlu0 %544
  %v546 = vsel %vm82, %v430, 0.0
  %547 = vadd.xlane.f32.xlu0 %v546
  %v548 = vpop.xlane.xlu0 %547
  %v549 = vsel %vm82, %v431, 0.0
  %550 = vadd.xlane.f32.xlu0 %v549
  %v551 = vpop.xlane.xlu0 %550
  %v552 = vsel %vm82, %v432, 0.0
  %553 = vadd.xlane.f32.xlu0 %v552
  %v554 = vpop.xlane.xlu0 %553
  %v555 = vsel %vm82, %v433, 0.0
  %556 = vadd.xlane.f32.xlu0 %v555
  %v557 = vpop.xlane.xlu0 %556
  %v558 = vsel %vm82, %v434, 0.0
  %559 = vadd.xlane.f32.xlu0 %v558
  %v560 = vpop.xlane.xlu0 %559
  %v561 = vsel %vm82, %v435, 0.0
  %562 = vadd.xlane.f32.xlu0 %v561
  %v563 = vpop.xlane.xlu0 %562
  %v564 = vsel %vm82, %v436, 0.0
  %565 = vadd.xlane.f32.xlu0 %v564
  %v566 = vpop.xlane.xlu0 %565
  %v567 = vsel %vm82, %v437, 0.0
  %568 = vadd.xlane.f32.xlu0 %v567
  %v569 = vpop.xlane.xlu0 %568
  %v570 = vsel %vm82, %v438, 0.0
  %571 = vadd.xlane.f32.xlu0 %v570
  %v572 = vpop.xlane.xlu0 %571
  %v573 = vsel %vm82, %v439, 0.0
  %574 = vadd.xlane.f32.xlu0 %v573
  %v575 = vpop.xlane.xlu0 %574
  %v576 = vsel %vm82, %v440, 0.0
  %577 = vadd.xlane.f32.xlu0 %v576
  %v578 = vpop.xlane.xlu0 %577
  %v579 = vsel %vm82, %v441, 0.0
  %580 = vadd.xlane.f32.xlu0 %v579
  %v581 = vpop.xlane.xlu0 %580
  %v582 = vsel %vm82, %v442, 0.0
  %583 = vadd.xlane.f32.xlu0 %v582
  %v584 = vpop.xlane.xlu0 %583
  %v585 = vsel %vm82, %v443, 0.0
  %586 = vadd.xlane.f32.xlu0 %v585
  %v587 = vpop.xlane.xlu0 %586
  %v588 = vsel %vm82, %v444, 0.0
  %589 = vadd.xlane.f32.xlu0 %v588
  %v590 = vpop.xlane.xlu0 %589
  %v591 = vsel %vm82, %v445, 0.0
  %592 = vadd.xlane.f32.xlu0 %v591
  %v593 = vpop.xlane.xlu0 %592
  %v594 = vsel %vm82, %v446, 0.0
  %595 = vadd.xlane.f32.xlu0 %v594
  %v596 = vpop.xlane.xlu0 %595
  %v597 = vsel %vm82, %v447, 0.0
  %598 = vadd.xlane.f32.xlu0 %v597
  %v599 = vpop.xlane.xlu0 %598
  %v600 = vsel %vm82, %v448, 0.0
  %601 = vadd.xlane.f32.xlu0 %v600
  %v602 = vpop.xlane.xlu0 %601
  %v603 = vsel %vm82, %v449, 0.0
  %604 = vadd.xlane.f32.xlu0 %v603
  %v605 = vpop.xlane.xlu0 %604
  %v606 = vsel %vm82, %v450, 0.0
  %607 = vadd.xlane.f32.xlu0 %v606
  %v608 = vpop.xlane.xlu0 %607
  %v609 = vsel %vm82, %v451, 0.0
  %610 = vadd.xlane.f32.xlu0 %v609
  %v611 = vpop.xlane.xlu0 %610
  %v612 = vsel %vm82, %v452, 0.0
  %613 = vadd.xlane.f32.xlu0 %v612
  %v614 = vpop.xlane.xlu0 %613
  %v615 = vsel %vm82, %v453, 0.0
  %616 = vadd.xlane.f32.xlu0 %v615
  %v617 = vpop.xlane.xlu0 %616
  %v618 = vsel %vm82, %v454, 0.0
  %619 = vadd.xlane.f32.xlu0 %v618
  %v620 = vpop.xlane.xlu0 %619
  %v621 = vsel %vm82, %v455, 0.0
  %622 = vadd.xlane.f32.xlu0 %v621
  %v623 = vpop.xlane.xlu0 %622
  %v624 = vsel %vm82, %v456, 0.0
  %625 = vadd.xlane.f32.xlu0 %v624
  %v626 = vpop.xlane.xlu0 %625
  %v627 = vsel %vm82, %v457, 0.0
  %628 = vadd.xlane.f32.xlu0 %v627
  %v629 = vpop.xlane.xlu0 %628
  %v630 = vsel %vm82, %v458, 0.0
  %631 = vadd.xlane.f32.xlu0 %v630
  %v632 = vpop.xlane.xlu0 %631
  %v633 = vsel %vm82, %v459, 0.0
  %634 = vadd.xlane.f32.xlu0 %v633
  %v635 = vpop.xlane.xlu0 %634
  %v636 = vsel %vm82, %v460, 0.0
  %637 = vadd.xlane.f32.xlu0 %v636
  %v638 = vpop.xlane.xlu0 %637
  %v639 = vsel %vm82, %v461, 0.0
  %640 = vadd.xlane.f32.xlu0 %v639
  %v641 = vpop.xlane.xlu0 %640
  %v642 = vsel %vm82, %v462, 0.0
  %643 = vadd.xlane.f32.xlu0 %v642
  %v644 = vpop.xlane.xlu0 %643
  %v645 = vsel %vm82, %v463, 0.0
  %646 = vadd.xlane.f32.xlu0 %v645
  %v647 = vpop.xlane.xlu0 %646
  %v648 = vsel %vm82, %v464, 0.0
  %649 = vadd.xlane.f32.xlu0 %v648
  %v650 = vpop.xlane.xlu0 %649
  %v651 = vsel %vm82, %v465, 0.0
  %652 = vadd.xlane.f32.xlu0 %v651
  %v653 = vpop.xlane.xlu0 %652
  %v654 = vsel %vm82, %v466, 0.0
  %655 = vadd.xlane.f32.xlu0 %v654
  %v656 = vpop.xlane.xlu0 %655
  %v657 = vsel %vm82, %v467, 0.0
  %658 = vadd.xlane.f32.xlu0 %v657
  %v659 = vpop.xlane.xlu0 %658
  %v660 = vmul.f32 %v470, %v275
  %v661 = vmul.f32 %v473, %v275
  %v662 = vmul.f32 %v476, %v275
  %v663 = vmul.f32 %v479, %v275
  %v664 = vmul.f32 %v482, %v275
  %v665 = vmul.f32 %v485, %v275
  %v666 = vmul.f32 %v488, %v275
  %v667 = vmul.f32 %v491, %v275
  %v668 = vmul.f32 %v494, %v275
  %v669 = vmul.f32 %v497, %v275
  %v670 = vmul.f32 %v500, %v275
  %v671 = vmul.f32 %v503, %v275
  %v672 = vmul.f32 %v506, %v275
  %v673 = vmul.f32 %v509, %v275
  %v674 = vmul.f32 %v512, %v275
  %v675 = vmul.f32 %v515, %v275
  %v676 = vmul.f32 %v518, %v275
  %v677 = vmul.f32 %v521, %v275
  %v678 = vmul.f32 %v524, %v275
  %v679 = vmul.f32 %v527, %v275
  %v680 = vmul.f32 %v530, %v275
  %v681 = vmul.f32 %v533, %v275
  %v682 = vmul.f32 %v536, %v275
  %v683 = vmul.f32 %v539, %v275
  %v684 = vmul.f32 %v542, %v275
  %v685 = vmul.f32 %v545, %v275
  %v686 = vmul.f32 %v548, %v275
  %v687 = vmul.f32 %v551, %v275
  %v688 = vmul.f32 %v554, %v275
  %v689 = vmul.f32 %v557, %v275
  %v690 = vmul.f32 %v560, %v275
  %v691 = vmul.f32 %v563, %v275
  %v692 = vmul.f32 %v566, %v275
  %v693 = vmul.f32 %v569, %v275
  %v694 = vmul.f32 %v572, %v275
  %v695 = vmul.f32 %v575, %v275
  %v696 = vmul.f32 %v578, %v275
  %v697 = vmul.f32 %v581, %v275
  %v698 = vmul.f32 %v584, %v275
  %v699 = vmul.f32 %v587, %v275
  %v700 = vmul.f32 %v590, %v275
  %v701 = vmul.f32 %v593, %v275
  %v702 = vmul.f32 %v596, %v275
  %v703 = vmul.f32 %v599, %v275
  %v704 = vmul.f32 %v602, %v275
  %v705 = vmul.f32 %v605, %v275
  %v706 = vmul.f32 %v608, %v275
  %v707 = vmul.f32 %v611, %v275
  %v708 = vmul.f32 %v614, %v275
  %v709 = vmul.f32 %v617, %v275
  %v710 = vmul.f32 %v620, %v275
  %v711 = vmul.f32 %v623, %v275
  %v712 = vmul.f32 %v626, %v275
  %v713 = vmul.f32 %v629, %v275
  %v714 = vmul.f32 %v632, %v275
  %v715 = vmul.f32 %v635, %v275
  %v716 = vmul.f32 %v638, %v275
  %v717 = vmul.f32 %v641, %v275
  %v718 = vmul.f32 %v644, %v275
  %v719 = vmul.f32 %v647, %v275
  %v720 = vmul.f32 %v650, %v275
  %v721 = vmul.f32 %v653, %v275
  %v722 = vmul.f32 %v656, %v275
  %v723 = vmul.f32 %v659, %v275
  %v724 = vadd.f32 %v660, 1e-05
  %v725 = vadd.f32 %v661, 1e-05
  %v726 = vadd.f32 %v662, 1e-05
  %v727 = vadd.f32 %v663, 1e-05
  %v728 = vadd.f32 %v664, 1e-05
  %v729 = vadd.f32 %v665, 1e-05
  %v730 = vadd.f32 %v666, 1e-05
  %v731 = vadd.f32 %v667, 1e-05
  %v732 = vadd.f32 %v668, 1e-05
  %v733 = vadd.f32 %v669, 1e-05
  %v734 = vadd.f32 %v670, 1e-05
  %v735 = vadd.f32 %v671, 1e-05
  %v736 = vadd.f32 %v672, 1e-05
  %v737 = vadd.f32 %v673, 1e-05
  %v738 = vadd.f32 %v674, 1e-05
  %v739 = vadd.f32 %v675, 1e-05
  %v740 = vadd.f32 %v676, 1e-05
  %v741 = vadd.f32 %v677, 1e-05
  %v742 = vadd.f32 %v678, 1e-05
  %v743 = vadd.f32 %v679, 1e-05
  %v744 = vadd.f32 %v680, 1e-05
  %v745 = vadd.f32 %v681, 1e-05
  %v746 = vadd.f32 %v682, 1e-05
  %v747 = vadd.f32 %v683, 1e-05
  %v748 = vadd.f32 %v684, 1e-05
  %v749 = vadd.f32 %v685, 1e-05
  %v750 = vadd.f32 %v686, 1e-05
  %v751 = vadd.f32 %v687, 1e-05
  %v752 = vadd.f32 %v688, 1e-05
  %v753 = vadd.f32 %v689, 1e-05
  %v754 = vadd.f32 %v690, 1e-05
  %v755 = vadd.f32 %v691, 1e-05
  %v756 = vadd.f32 %v692, 1e-05
  %v757 = vadd.f32 %v693, 1e-05
  %v758 = vadd.f32 %v694, 1e-05
  %v759 = vadd.f32 %v695, 1e-05
  %v760 = vadd.f32 %v696, 1e-05
  %v761 = vadd.f32 %v697, 1e-05
  %v762 = vadd.f32 %v698, 1e-05
  %v763 = vadd.f32 %v699, 1e-05
  %v764 = vadd.f32 %v700, 1e-05
  %v765 = vadd.f32 %v701, 1e-05
  %v766 = vadd.f32 %v702, 1e-05
  %v767 = vadd.f32 %v703, 1e-05
  %v768 = vadd.f32 %v704, 1e-05
  %v769 = vadd.f32 %v705, 1e-05
  %v770 = vadd.f32 %v706, 1e-05
  %v771 = vadd.f32 %v707, 1e-05
  %v772 = vadd.f32 %v708, 1e-05
  %v773 = vadd.f32 %v709, 1e-05
  %v774 = vadd.f32 %v710, 1e-05
  %v775 = vadd.f32 %v711, 1e-05
  %v776 = vadd.f32 %v712, 1e-05
  %v777 = vadd.f32 %v713, 1e-05
  %v778 = vadd.f32 %v714, 1e-05
  %v779 = vadd.f32 %v715, 1e-05
  %v780 = vadd.f32 %v716, 1e-05
  %v781 = vadd.f32 %v717, 1e-05
  %v782 = vadd.f32 %v718, 1e-05
  %v783 = vadd.f32 %v719, 1e-05
  %v784 = vadd.f32 %v720, 1e-05
  %v785 = vadd.f32 %v721, 1e-05
  %v786 = vadd.f32 %v722, 1e-05
  %v787 = vadd.f32 %v723, 1e-05
  %v788 = vrsqrt.pop %v724
  %v789 = vrsqrt.pop %v725
  %v790 = vrsqrt.pop %v726
  %v791 = vrsqrt.pop %v727
  %v792 = vrsqrt.pop %v728
  %v793 = vrsqrt.pop %v729
  %v794 = vrsqrt.pop %v730
  %v795 = vrsqrt.pop %v731
  %v796 = vrsqrt.pop %v732
  %v797 = vrsqrt.pop %v733
  %v798 = vrsqrt.pop %v734
  %v799 = vrsqrt.pop %v735
  %v800 = vrsqrt.pop %v736
  %v801 = vrsqrt.pop %v737
  %v802 = vrsqrt.pop %v738
  %v803 = vrsqrt.pop %v739
  %v804 = vrsqrt.pop %v740
  %v805 = vrsqrt.pop %v741
  %v806 = vrsqrt.pop %v742
  %v807 = vrsqrt.pop %v743
  %v808 = vrsqrt.pop %v744
  %v809 = vrsqrt.pop %v745
  %v810 = vrsqrt.pop %v746
  %v811 = vrsqrt.pop %v747
  %v812 = vrsqrt.pop %v748
  %v813 = vrsqrt.pop %v749
  %v814 = vrsqrt.pop %v750
  %v815 = vrsqrt.pop %v751
  %v816 = vrsqrt.pop %v752
  %v817 = vrsqrt.pop %v753
  %v818 = vrsqrt.pop %v754
  %v819 = vrsqrt.pop %v755
  %v820 = vrsqrt.pop %v756
  %v821 = vrsqrt.pop %v757
  %v822 = vrsqrt.pop %v758
  %v823 = vrsqrt.pop %v759
  %v824 = vrsqrt.pop %v760
  %v825 = vrsqrt.pop %v761
  %v826 = vrsqrt.pop %v762
  %v827 = vrsqrt.pop %v763
  %v828 = vrsqrt.pop %v764
  %v829 = vrsqrt.pop %v765
  %v830 = vrsqrt.pop %v766
  %v831 = vrsqrt.pop %v767
  %v832 = vrsqrt.pop %v768
  %v833 = vrsqrt.pop %v769
  %v834 = vrsqrt.pop %v770
  %v835 = vrsqrt.pop %v771
  %v836 = vrsqrt.pop %v772
  %v837 = vrsqrt.pop %v773
  %v838 = vrsqrt.pop %v774
  %v839 = vrsqrt.pop %v775
  %v840 = vrsqrt.pop %v776
  %v841 = vrsqrt.pop %v777
  %v842 = vrsqrt.pop %v778
  %v843 = vrsqrt.pop %v779
  %v844 = vrsqrt.pop %v780
  %v845 = vrsqrt.pop %v781
  %v846 = vrsqrt.pop %v782
  %v847 = vrsqrt.pop %v783
  %v848 = vrsqrt.pop %v784
  %v849 = vrsqrt.pop %v785
  %v850 = vrsqrt.pop %v786
  %v851 = vrsqrt.pop %v787
  %v852 = vmul.f32 %v340, %v788
  %v853 = vmul.f32 %v341, %v789
  %v854 = vmul.f32 %v342, %v790
  %v855 = vmul.f32 %v343, %v791
  %v856 = vmul.f32 %v344, %v792
  %v857 = vmul.f32 %v345, %v793
  %v858 = vmul.f32 %v346, %v794
  %v859 = vmul.f32 %v347, %v795
  %v860 = vmul.f32 %v348, %v796
  %v861 = vmul.f32 %v349, %v797
  %v862 = vmul.f32 %v350, %v798
  %v863 = vmul.f32 %v351, %v799
  %v864 = vmul.f32 %v352, %v800
  %v865 = vmul.f32 %v353, %v801
  %v866 = vmul.f32 %v354, %v802
  %v867 = vmul.f32 %v355, %v803
  %v868 = vmul.f32 %v356, %v804
  %v869 = vmul.f32 %v357, %v805
  %v870 = vmul.f32 %v358, %v806
  %v871 = vmul.f32 %v359, %v807
  %v872 = vmul.f32 %v360, %v808
  %v873 = vmul.f32 %v361, %v809
  %v874 = vmul.f32 %v362, %v810
  %v875 = vmul.f32 %v363, %v811
  %v876 = vmul.f32 %v364, %v812
  %v877 = vmul.f32 %v365, %v813
  %v878 = vmul.f32 %v366, %v814
  %v879 = vmul.f32 %v367, %v815
  %v880 = vmul.f32 %v368, %v816
  %v881 = vmul.f32 %v369, %v817
  %v882 = vmul.f32 %v370, %v818
  %v883 = vmul.f32 %v371, %v819
  %v884 = vmul.f32 %v372, %v820
  %v885 = vmul.f32 %v373, %v821
  %v886 = vmul.f32 %v374, %v822
  %v887 = vmul.f32 %v375, %v823
  %v888 = vmul.f32 %v376, %v824
  %v889 = vmul.f32 %v377, %v825
  %v890 = vmul.f32 %v378, %v826
  %v891 = vmul.f32 %v379, %v827
  %v892 = vmul.f32 %v380, %v828
  %v893 = vmul.f32 %v381, %v829
  %v894 = vmul.f32 %v382, %v830
  %v895 = vmul.f32 %v383, %v831
  %v896 = vmul.f32 %v384, %v832
  %v897 = vmul.f32 %v385, %v833
  %v898 = vmul.f32 %v386, %v834
  %v899 = vmul.f32 %v387, %v835
  %v900 = vmul.f32 %v388, %v836
  %v901 = vmul.f32 %v389, %v837
  %v902 = vmul.f32 %v390, %v838
  %v903 = vmul.f32 %v391, %v839
  %v904 = vmul.f32 %v392, %v840
  %v905 = vmul.f32 %v393, %v841
  %v906 = vmul.f32 %v394, %v842
  %v907 = vmul.f32 %v395, %v843
  %v908 = vmul.f32 %v396, %v844
  %v909 = vmul.f32 %v397, %v845
  %v910 = vmul.f32 %v398, %v846
  %v911 = vmul.f32 %v399, %v847
  %v912 = vmul.f32 %v400, %v848
  %v913 = vmul.f32 %v401, %v849
  %v914 = vmul.f32 %v402, %v850
  %v915 = vmul.f32 %v403, %v851
  %v916 = vld [vmem:[%s1] sm:$0x1]
  %v918 = vlaneseq
  %v919 = vshrl.u32 %v918, 7
  %v920 = vsub.s32 0, %v919
  %v921 = vrot.slane %v916, %v920
  %v923 = vmul.f32 %v852, %v921
  %v924 = vmul.f32 %v853, %v921
  %v925 = vmul.f32 %v854, %v921
  %v926 = vmul.f32 %v855, %v921
  %v927 = vmul.f32 %v856, %v921
  %v928 = vmul.f32 %v857, %v921
  %v929 = vmul.f32 %v858, %v921
  %v930 = vmul.f32 %v859, %v921
  %v931 = vmul.f32 %v860, %v921
  %v932 = vmul.f32 %v861, %v921
  %v933 = vmul.f32 %v862, %v921
  %v934 = vmul.f32 %v863, %v921
  %v935 = vmul.f32 %v864, %v921
  %v936 = vmul.f32 %v865, %v921
  %v937 = vmul.f32 %v866, %v921
  %v938 = vmul.f32 %v867, %v921
  %v939 = vmul.f32 %v868, %v921
  %v940 = vmul.f32 %v869, %v921
  %v941 = vmul.f32 %v870, %v921
  %v942 = vmul.f32 %v871, %v921
  %v943 = vmul.f32 %v872, %v921
  %v944 = vmul.f32 %v873, %v921
  %v945 = vmul.f32 %v874, %v921
  %v946 = vmul.f32 %v875, %v921
  %v947 = vmul.f32 %v876, %v921
  %v948 = vmul.f32 %v877, %v921
  %v949 = vmul.f32 %v878, %v921
  %v950 = vmul.f32 %v879, %v921
  %v951 = vmul.f32 %v880, %v921
  %v952 = vmul.f32 %v881, %v921
  %v953 = vmul.f32 %v882, %v921
  %v954 = vmul.f32 %v883, %v921
  %v955 = vmul.f32 %v884, %v921
  %v956 = vmul.f32 %v885, %v921
  %v957 = vmul.f32 %v886, %v921
  %v958 = vmul.f32 %v887, %v921
  %v959 = vmul.f32 %v888, %v921
  %v960 = vmul.f32 %v889, %v921
  %v961 = vmul.f32 %v890, %v921
  %v962 = vmul.f32 %v891, %v921
  %v963 = vmul.f32 %v892, %v921
  %v964 = vmul.f32 %v893, %v921
  %v965 = vmul.f32 %v894, %v921
  %v966 = vmul.f32 %v895, %v921
  %v967 = vmul.f32 %v896, %v921
  %v968 = vmul.f32 %v897, %v921
  %v969 = vmul.f32 %v898, %v921
  %v970 = vmul.f32 %v899, %v921
  %v971 = vmul.f32 %v900, %v921
  %v972 = vmul.f32 %v901, %v921
  %v973 = vmul.f32 %v902, %v921
  %v974 = vmul.f32 %v903, %v921
  %v975 = vmul.f32 %v904, %v921
  %v976 = vmul.f32 %v905, %v921
  %v977 = vmul.f32 %v906, %v921
  %v978 = vmul.f32 %v907, %v921
  %v979 = vmul.f32 %v908, %v921
  %v980 = vmul.f32 %v909, %v921
  %v981 = vmul.f32 %v910, %v921
  %v982 = vmul.f32 %v911, %v921
  %v983 = vmul.f32 %v912, %v921
  %v984 = vmul.f32 %v913, %v921
  %v985 = vmul.f32 %v914, %v921
  %v986 = vmul.f32 %v915, %v921
  %v987 = vld [vmem:[%s2] sm:$0x1]
  %v989 = vlaneseq
  %v990 = vshrl.u32 %v989, 7
  %v991 = vsub.s32 0, %v990
  %v992 = vrot.slane %v987, %v991
  %v994 = vadd.f32 %v923, %v992
  %v995 = vadd.f32 %v924, %v992
  %v996 = vadd.f32 %v925, %v992
  %v997 = vadd.f32 %v926, %v992
  %v998 = vadd.f32 %v927, %v992
  %v999 = vadd.f32 %v928, %v992
  %v1000 = vadd.f32 %v929, %v992
  %v1001 = vadd.f32 %v930, %v992
  %v1002 = vadd.f32 %v931, %v992
  %v1003 = vadd.f32 %v932, %v992
  %v1004 = vadd.f32 %v933, %v992
  %v1005 = vadd.f32 %v934, %v992
  %v1006 = vadd.f32 %v935, %v992
  %v1007 = vadd.f32 %v936, %v992
  %v1008 = vadd.f32 %v937, %v992
  %v1009 = vadd.f32 %v938, %v992
  %v1010 = vadd.f32 %v939, %v992
  %v1011 = vadd.f32 %v940, %v992
  %v1012 = vadd.f32 %v941, %v992
  %v1013 = vadd.f32 %v942, %v992
  %v1014 = vadd.f32 %v943, %v992
  %v1015 = vadd.f32 %v944, %v992
  %v1016 = vadd.f32 %v945, %v992
  %v1017 = vadd.f32 %v946, %v992
  %v1018 = vadd.f32 %v947, %v992
  %v1019 = vadd.f32 %v948, %v992
  %v1020 = vadd.f32 %v949, %v992
  %v1021 = vadd.f32 %v950, %v992
  %v1022 = vadd.f32 %v951, %v992
  %v1023 = vadd.f32 %v952, %v992
  %v1024 = vadd.f32 %v953, %v992
  %v1025 = vadd.f32 %v954, %v992
  %v1026 = vadd.f32 %v955, %v992
  %v1027 = vadd.f32 %v956, %v992
  %v1028 = vadd.f32 %v957, %v992
  %v1029 = vadd.f32 %v958, %v992
  %v1030 = vadd.f32 %v959, %v992
  %v1031 = vadd.f32 %v960, %v992
  %v1032 = vadd.f32 %v961, %v992
  %v1033 = vadd.f32 %v962, %v992
  %v1034 = vadd.f32 %v963, %v992
  %v1035 = vadd.f32 %v964, %v992
  %v1036 = vadd.f32 %v965, %v992
  %v1037 = vadd.f32 %v966, %v992
  %v1038 = vadd.f32 %v967, %v992
  %v1039 = vadd.f32 %v968, %v992
  %v1040 = vadd.f32 %v969, %v992
  %v1041 = vadd.f32 %v970, %v992
  %v1042 = vadd.f32 %v971, %v992
  %v1043 = vadd.f32 %v972, %v992
  %v1044 = vadd.f32 %v973, %v992
  %v1045 = vadd.f32 %v974, %v992
  %v1046 = vadd.f32 %v975, %v992
  %v1047 = vadd.f32 %v976, %v992
  %v1048 = vadd.f32 %v977, %v992
  %v1049 = vadd.f32 %v978, %v992
  %v1050 = vadd.f32 %v979, %v992
  %v1051 = vadd.f32 %v980, %v992
  %v1052 = vadd.f32 %v981, %v992
  %v1053 = vadd.f32 %v982, %v992
  %v1054 = vadd.f32 %v983, %v992
  %v1055 = vadd.f32 %v984, %v992
  %v1056 = vadd.f32 %v985, %v992
  %v1057 = vadd.f32 %v986, %v992
  %v1058 = vpack.c.bf16 %v995, %v994
  %v1059 = vpack.c.bf16 %v997, %v996
  %v1060 = vpack.c.bf16 %v999, %v998
  %v1061 = vpack.c.bf16 %v1001, %v1000
  %v1062 = vpack.c.bf16 %v1003, %v1002
  %v1063 = vpack.c.bf16 %v1005, %v1004
  %v1064 = vpack.c.bf16 %v1007, %v1006
  %v1065 = vpack.c.bf16 %v1009, %v1008
  %v1066 = vpack.c.bf16 %v1011, %v1010
  %v1067 = vpack.c.bf16 %v1013, %v1012
  %v1068 = vpack.c.bf16 %v1015, %v1014
  %v1069 = vpack.c.bf16 %v1017, %v1016
  %v1070 = vpack.c.bf16 %v1019, %v1018
  %v1071 = vpack.c.bf16 %v1021, %v1020
  %v1072 = vpack.c.bf16 %v1023, %v1022
  %v1073 = vpack.c.bf16 %v1025, %v1024
  %v1074 = vpack.c.bf16 %v1027, %v1026
  %v1075 = vpack.c.bf16 %v1029, %v1028
  %v1076 = vpack.c.bf16 %v1031, %v1030
  %v1077 = vpack.c.bf16 %v1033, %v1032
  %v1078 = vpack.c.bf16 %v1035, %v1034
  %v1079 = vpack.c.bf16 %v1037, %v1036
  %v1080 = vpack.c.bf16 %v1039, %v1038
  %v1081 = vpack.c.bf16 %v1041, %v1040
  %v1082 = vpack.c.bf16 %v1043, %v1042
  %v1083 = vpack.c.bf16 %v1045, %v1044
  %v1084 = vpack.c.bf16 %v1047, %v1046
  %v1085 = vpack.c.bf16 %v1049, %v1048
  %v1086 = vpack.c.bf16 %v1051, %v1050
  %v1087 = vpack.c.bf16 %v1053, %v1052
  %v1088 = vpack.c.bf16 %v1055, %v1054
  %v1089 = vpack.c.bf16 %v1057, %v1056
  %v1090 = vld [vmem:[%s3] sm:$0xf]
  %v1091 = vld [vmem:[%s3 + $0x4] sm:$0xf]
  %v1094 = vunpack.c.l.b16 %v1090
  %v1095 = vunpack.c.l.b16 %v1091
  %v1096 = vpack.c.b16 %v1095, %v1094
  %v1099 = vsel %vm82, %v1058, 0
  %v1102 = vsel %vm82, %v1059, 0
  %v1105 = vsel %vm82, %v1060, 0
  %v1108 = vsel %vm82, %v1061, 0
  %v1111 = vsel %vm82, %v1062, 0
  %v1114 = vsel %vm82, %v1063, 0
  %v1117 = vsel %vm82, %v1064, 0
  %v1120 = vsel %vm82, %v1065, 0
  %v1123 = vsel %vm82, %v1066, 0
  %v1126 = vsel %vm82, %v1067, 0
  %v1129 = vsel %vm82, %v1068, 0
  %v1132 = vsel %vm82, %v1069, 0
  %v1135 = vsel %vm82, %v1070, 0
  %v1138 = vsel %vm82, %v1071, 0
  %v1141 = vsel %vm82, %v1072, 0
  %v1144 = vsel %vm82, %v1073, 0
  %v1147 = vsel %vm82, %v1074, 0
  %v1150 = vsel %vm82, %v1075, 0
  %v1153 = vsel %vm82, %v1076, 0
  %v1156 = vsel %vm82, %v1077, 0
  %v1159 = vsel %vm82, %v1078, 0
  %v1162 = vsel %vm82, %v1079, 0
  %v1165 = vsel %vm82, %v1080, 0
  %v1168 = vsel %vm82, %v1081, 0
  %v1171 = vsel %vm82, %v1082, 0
  %v1174 = vsel %vm82, %v1083, 0
  %v1177 = vsel %vm82, %v1084, 0
  %v1180 = vsel %vm82, %v1085, 0
  %v1183 = vsel %vm82, %v1086, 0
  %v1186 = vsel %vm82, %v1087, 0
  %v1189 = vsel %vm82, %v1088, 0
  %v1192 = vsel %vm82, %v1089, 0
  %1194 = vmatprep.subr.bf16.mxu0 0
  %1195 = vmatpush1.bf16.msra.mxu0 %v1096
  %1196 = vmatprep.subr.bf16.mxu0 0
  %1197 = vmatpush1.bf16.msra.mxu0 0
  %1198 = vmatprep.subr.bf16.mxu0 0
  %1199 = vmatpush1.bf16.msra.mxu0 0
  %1200 = vmatprep.subr.bf16.mxu0 0
  %1201 = vmatpush1.bf16.msra.mxu0 0
  %1202 = vmatprep.subr.bf16.mxu0 0
  %1203 = vmatpush1.bf16.msra.mxu0 0
  %1204 = vmatprep.subr.bf16.mxu0 0
  %1205 = vmatpush1.bf16.msra.mxu0 0
  %1206 = vmatprep.subr.bf16.mxu0 0
  %1207 = vmatpush1.bf16.msra.mxu0 0
  %1208 = vmatprep.subr.bf16.mxu0 0
  %1209 = vmatpush1.bf16.msra.mxu0 0
  %1210 = vmatprep.subr.bf16.mxu0 0
  %1211 = vmatpush1.bf16.msra.mxu0 0
  %1212 = vmatprep.subr.bf16.mxu0 0
  %1213 = vmatpush1.bf16.msra.mxu0 0
  %1214 = vmatprep.subr.bf16.mxu0 0
  %1215 = vmatpush1.bf16.msra.mxu0 0
  %1216 = vmatprep.subr.bf16.mxu0 0
  %1217 = vmatpush1.bf16.msra.mxu0 0
  %1218 = vmatprep.subr.bf16.mxu0 0
  %1219 = vmatpush1.bf16.msra.mxu0 0
  %1220 = vmatprep.subr.bf16.mxu0 0
  %1221 = vmatpush1.bf16.msra.mxu0 0
  %1222 = vmatprep.subr.bf16.mxu0 0
  %1223 = vmatpush1.bf16.msra.mxu0 0
  %1224 = vmatprep.subr.bf16.mxu0 0
  %1225 = vmatpush1.bf16.msra.mxu0 0
  %1226 = vmatprep.mubr.bf16.mxu0 0
  %1227 = vmatmul.mubr.bf16.gmra.mrb[0].mxu0 %v1099
  %v1228 = vpop.f32.mrb[0].mxu0
  %v1229 = vadd.f32 0.0, %v1228
  %v1230 = vpop.f32.mrb[0].mxu0
  %v1231 = vpop.f32.mrb[0].mxu0
  %v1232 = vadd.f32 0.0, %v1231
  %v1233 = vpop.f32.mrb[0].mxu0
  %1234 = vmatprep.mubr.bf16.mxu0 0
  %1235 = vmatmul.mubr.bf16.gmra.mrb[0].mxu0 %v1102
  %v1236 = vpop.f32.mrb[0].mxu0
  %v1237 = vadd.f32 0.0, %v1236
  %v1238 = vpop.f32.mrb[0].mxu0
  %v1239 = vpop.f32.mrb[0].mxu0
  %v1240 = vadd.f32 0.0, %v1239
  %v1241 = vpop.f32.mrb[0].mxu0
  %1242 = vmatprep.mubr.bf16.mxu0 0
  %1243 = vmatmul.mubr.bf16.gmra.mrb[0].mxu0 %v1105
  %v1244 = vpop.f32.mrb[0].mxu0
  %v1245 = vadd.f32 0.0, %v1244
  %v1246 = vpop.f32.mrb[0].mxu0
  %v1247 = vpop.f32.mrb[0].mxu0
  %v1248 = vadd.f32 0.0, %v1247
  %v1249 = vpop.f32.mrb[0].mxu0
  %1250 = vmatprep.mubr.bf16.mxu0 0
  %1251 = vmatmul.mubr.bf16.gmra.mrb[0].mxu0 %v1108
  %v1252 = vpop.f32.mrb[0].mxu0
  %v1253 = vadd.f32 0.0, %v1252
  %v1254 = vpop.f32.mrb[0].mxu0
  %v1255 = vpop.f32.mrb[0].mxu0
  %v1256 = vadd.f32 0.0, %v1255
  %v1257 = vpop.f32.mrb[0].mxu0
  %1258 = vmatprep.mubr.bf16.mxu0 0
  %1259 = vmatmul.mubr.bf16.gmra.mrb[0].mxu0 %v1111
  %v1260 = vpop.f32.mrb[0].mxu0
  %v1261 = vadd.f32 0.0, %v1260
  %v1262 = vpop.f32.mrb[0].mxu0
  %v1263 = vpop.f32.mrb[0].mxu0
  %v1264 = vadd.f32 0.0, %v1263
  %v1265 = vpop.f32.mrb[0].mxu0
  %1266 = vmatprep.mubr.bf16.mxu0 0
  %1267 = vmatmul.mubr.bf16.gmra.mrb[0].mxu0 %v1114
  %v1268 = vpop.f32.mrb[0].mxu0
  %v1269 = vadd.f32 0.0, %v1268
  %v1270 = vpop.f32.mrb[0].mxu0
  %v1271 = vpop.f32.mrb[0].mxu0
  %v1272 = vadd.f32 0.0, %v1271
  %v1273 = vpop.f32.mrb[0].mxu0
  %1274 = vmatprep.mubr.bf16.mxu0 0
  %1275 = vmatmul.mubr.bf16.gmra.mrb[0].mxu0 %v1117
  %v1276 = vpop.f32.mrb[0].mxu0
  %v1277 = vadd.f32 0.0, %v1276
  %v1278 = vpop.f32.mrb[0].mxu0
  %v1279 = vpop.f32.mrb[0].mxu0
  %v1280 = vadd.f32 0.0, %v1279
  %v1281 = vpop.f32.mrb[0].mxu0
  %1282 = vmatprep.mubr.bf16.mxu0 0
  %1283 = vmatmul.mubr.bf16.gmra.mrb[0].mxu0 %v1120
  %v1284 = vpop.f32.mrb[0].mxu0
  %v1285 = vadd.f32 0.0, %v1284
  %v1286 = vpop.f32.mrb[0].mxu0
  %v1287 = vpop.f32.mrb[0].mxu0
  %v1288 = vadd.f32 0.0, %v1287
  %v1289 = vpop.f32.mrb[0].mxu0
  %1290 = vmatprep.mubr.bf16.mxu0 0
  %1291 = vmatmul.mubr.bf16.gmra.mrb[0].mxu0 %v1123
  %v1292 = vpop.f32.mrb[0].mxu0
  %v1293 = vadd.f32 0.0, %v1292
  %v1294 = vpop.f32.mrb[0].mxu0
  %v1295 = vpop.f32.mrb[0].mxu0
  %v1296 = vadd.f32 0.0, %v1295
  %v1297 = vpop.f32.mrb[0].mxu0
  %1298 = vmatprep.mubr.bf16.mxu0 0
  %1299 = vmatmul.mubr.bf16.gmra.mrb[0].mxu0 %v1126
  %v1300 = vpop.f32.mrb[0].mxu0
  %v1301 = vadd.f32 0.0, %v1300
  %v1302 = vpop.f32.mrb[0].mxu0
  %v1303 = vpop.f32.mrb[0].mxu0
  %v1304 = vadd.f32 0.0, %v1303
  %v1305 = vpop.f32.mrb[0].mxu0
  %1306 = vmatprep.mubr.bf16.mxu0 0
  %1307 = vmatmul.mubr.bf16.gmra.mrb[0].mxu0 %v1129
  %v1308 = vpop.f32.mrb[0].mxu0
  %v1309 = vadd.f32 0.0, %v1308
  %v1310 = vpop.f32.mrb[0].mxu0
  %v1311 = vpop.f32.mrb[0].mxu0
  %v1312 = vadd.f32 0.0, %v1311
  %v1313 = vpop.f32.mrb[0].mxu0
  %1314 = vmatprep.mubr.bf16.mxu0 0
  %1315 = vmatmul.mubr.bf16.gmra.mrb[0].mxu0 %v1132
  %v1316 = vpop.f32.mrb[0].mxu0
  %v1317 = vadd.f32 0.0, %v1316
  %v1318 = vpop.f32.mrb[0].mxu0
  %v1319 = vpop.f32.mrb[0].mxu0
  %v1320 = vadd.f32 0.0, %v1319
  %v1321 = vpop.f32.mrb[0].mxu0
  %1322 = vmatprep.mubr.bf16.mxu0 0
  %1323 = vmatmul.mubr.bf16.gmra.mrb[0].mxu0 %v1135
  %v1324 = vpop.f32.mrb[0].mxu0
  %v1325 = vadd.f32 0.0, %v1324
  %v1326 = vpop.f32.mrb[0].mxu0
  %v1327 = vpop.f32.mrb[0].mxu0
  %v1328 = vadd.f32 0.0, %v1327
  %v1329 = vpop.f32.mrb[0].mxu0
  %1330 = vmatprep.mubr.bf16.mxu0 0
  %1331 = vmatmul.mubr.bf16.gmra.mrb[0].mxu0 %v1138
  %v1332 = vpop.f32.mrb[0].mxu0
  %v1333 = vadd.f32 0.0, %v1332
  %v1334 = vpop.f32.mrb[0].mxu0
  %v1335 = vpop.f32.mrb[0].mxu0
  %v1336 = vadd.f32 0.0, %v1335
  %v1337 = vpop.f32.mrb[0].mxu0
  %1338 = vmatprep.mubr.bf16.mxu0 0
  %1339 = vmatmul.mubr.bf16.gmra.mrb[0].mxu0 %v1141
  %v1340 = vpop.f32.mrb[0].mxu0
  %v1341 = vadd.f32 0.0, %v1340
  %v1342 = vpop.f32.mrb[0].mxu0
  %v1343 = vpop.f32.mrb[0].mxu0
  %v1344 = vadd.f32 0.0, %v1343
  %v1345 = vpop.f32.mrb[0].mxu0
  %1346 = vmatprep.mubr.bf16.mxu0 0
  %1347 = vmatmul.mubr.bf16.gmra.mrb[0].mxu0 %v1144
  %v1348 = vpop.f32.mrb[0].mxu0
  %v1349 = vadd.f32 0.0, %v1348
  %v1350 = vpop.f32.mrb[0].mxu0
  %v1351 = vpop.f32.mrb[0].mxu0
  %v1352 = vadd.f32 0.0, %v1351
  %v1353 = vpop.f32.mrb[0].mxu0
  %1354 = vmatprep.mubr.bf16.mxu0 0
  %1355 = vmatmul.mubr.bf16.gmra.mrb[0].mxu0 %v1147
  %v1356 = vpop.f32.mrb[0].mxu0
  %v1357 = vadd.f32 0.0, %v1356
  %v1358 = vpop.f32.mrb[0].mxu0
  %v1359 = vpop.f32.mrb[0].mxu0
  %v1360 = vadd.f32 0.0, %v1359
  %v1361 = vpop.f32.mrb[0].mxu0
  %1362 = vmatprep.mubr.bf16.mxu0 0
  %1363 = vmatmul.mubr.bf16.gmra.mrb[0].mxu0 %v1150
  %v1364 = vpop.f32.mrb[0].mxu0
  %v1365 = vadd.f32 0.0, %v1364
  %v1366 = vpop.f32.mrb[0].mxu0
  %v1367 = vpop.f32.mrb[0].mxu0
  %v1368 = vadd.f32 0.0, %v1367
  %v1369 = vpop.f32.mrb[0].mxu0
  %1370 = vmatprep.mubr.bf16.mxu0 0
  %1371 = vmatmul.mubr.bf16.gmra.mrb[0].mxu0 %v1153
  %v1372 = vpop.f32.mrb[0].mxu0
  %v1373 = vadd.f32 0.0, %v1372
  %v1374 = vpop.f32.mrb[0].mxu0
  %v1375 = vpop.f32.mrb[0].mxu0
  %v1376 = vadd.f32 0.0, %v1375
  %v1377 = vpop.f32.mrb[0].mxu0
  %1378 = vmatprep.mubr.bf16.mxu0 0
  %1379 = vmatmul.mubr.bf16.gmra.mrb[0].mxu0 %v1156
  %v1380 = vpop.f32.mrb[0].mxu0
  %v1381 = vadd.f32 0.0, %v1380
  %v1382 = vpop.f32.mrb[0].mxu0
  %v1383 = vpop.f32.mrb[0].mxu0
  %v1384 = vadd.f32 0.0, %v1383
  %v1385 = vpop.f32.mrb[0].mxu0
  %1386 = vmatprep.mubr.bf16.mxu0 0
  %1387 = vmatmul.mubr.bf16.gmra.mrb[0].mxu0 %v1159
  %v1388 = vpop.f32.mrb[0].mxu0
  %v1389 = vadd.f32 0.0, %v1388
  %v1390 = vpop.f32.mrb[0].mxu0
  %v1391 = vpop.f32.mrb[0].mxu0
  %v1392 = vadd.f32 0.0, %v1391
  %v1393 = vpop.f32.mrb[0].mxu0
  %1394 = vmatprep.mubr.bf16.mxu0 0
  %1395 = vmatmul.mubr.bf16.gmra.mrb[0].mxu0 %v1162
  %v1396 = vpop.f32.mrb[0].mxu0
  %v1397 = vadd.f32 0.0, %v1396
  %v1398 = vpop.f32.mrb[0].mxu0
  %v1399 = vpop.f32.mrb[0].mxu0
  %v1400 = vadd.f32 0.0, %v1399
  %v1401 = vpop.f32.mrb[0].mxu0
  %1402 = vmatprep.mubr.bf16.mxu0 0
  %1403 = vmatmul.mubr.bf16.gmra.mrb[0].mxu0 %v1165
  %v1404 = vpop.f32.mrb[0].mxu0
  %v1405 = vadd.f32 0.0, %v1404
  %v1406 = vpop.f32.mrb[0].mxu0
  %v1407 = vpop.f32.mrb[0].mxu0
  %v1408 = vadd.f32 0.0, %v1407
  %v1409 = vpop.f32.mrb[0].mxu0
  %1410 = vmatprep.mubr.bf16.mxu0 0
  %1411 = vmatmul.mubr.bf16.gmra.mrb[0].mxu0 %v1168
  %v1412 = vpop.f32.mrb[0].mxu0
  %v1413 = vadd.f32 0.0, %v1412
  %v1414 = vpop.f32.mrb[0].mxu0
  %v1415 = vpop.f32.mrb[0].mxu0
  %v1416 = vadd.f32 0.0, %v1415
  %v1417 = vpop.f32.mrb[0].mxu0
  %1418 = vmatprep.mubr.bf16.mxu0 0
  %1419 = vmatmul.mubr.bf16.gmra.mrb[0].mxu0 %v1171
  %v1420 = vpop.f32.mrb[0].mxu0
  %v1421 = vadd.f32 0.0, %v1420
  %v1422 = vpop.f32.mrb[0].mxu0
  %v1423 = vpop.f32.mrb[0].mxu0
  %v1424 = vadd.f32 0.0, %v1423
  %v1425 = vpop.f32.mrb[0].mxu0
  %1426 = vmatprep.mubr.bf16.mxu0 0
  %1427 = vmatmul.mubr.bf16.gmra.mrb[0].mxu0 %v1174
  %v1428 = vpop.f32.mrb[0].mxu0
  %v1429 = vadd.f32 0.0, %v1428
  %v1430 = vpop.f32.mrb[0].mxu0
  %v1431 = vpop.f32.mrb[0].mxu0
  %v1432 = vadd.f32 0.0, %v1431
  %v1433 = vpop.f32.mrb[0].mxu0
  %1434 = vmatprep.mubr.bf16.mxu0 0
  %1435 = vmatmul.mubr.bf16.gmra.mrb[0].mxu0 %v1177
  %v1436 = vpop.f32.mrb[0].mxu0
  %v1437 = vadd.f32 0.0, %v1436
  %v1438 = vpop.f32.mrb[0].mxu0
  %v1439 = vpop.f32.mrb[0].mxu0
  %v1440 = vadd.f32 0.0, %v1439
  %v1441 = vpop.f32.mrb[0].mxu0
  %1442 = vmatprep.mubr.bf16.mxu0 0
  %1443 = vmatmul.mubr.bf16.gmra.mrb[0].mxu0 %v1180
  %v1444 = vpop.f32.mrb[0].mxu0
  %v1445 = vadd.f32 0.0, %v1444
  %v1446 = vpop.f32.mrb[0].mxu0
  %v1447 = vpop.f32.mrb[0].mxu0
  %v1448 = vadd.f32 0.0, %v1447
  %v1449 = vpop.f32.mrb[0].mxu0
  %1450 = vmatprep.mubr.bf16.mxu0 0
  %1451 = vmatmul.mubr.bf16.gmra.mrb[0].mxu0 %v1183
  %v1452 = vpop.f32.mrb[0].mxu0
  %v1453 = vadd.f32 0.0, %v1452
  %v1454 = vpop.f32.mrb[0].mxu0
  %v1455 = vpop.f32.mrb[0].mxu0
  %v1456 = vadd.f32 0.0, %v1455
  %v1457 = vpop.f32.mrb[0].mxu0
  %1458 = vmatprep.mubr.bf16.mxu0 0
  %1459 = vmatmul.mubr.bf16.gmra.mrb[0].mxu0 %v1186
  %v1460 = vpop.f32.mrb[0].mxu0
  %v1461 = vadd.f32 0.0, %v1460
  %v1462 = vpop.f32.mrb[0].mxu0
  %v1463 = vpop.f32.mrb[0].mxu0
  %v1464 = vadd.f32 0.0, %v1463
  %v1465 = vpop.f32.mrb[0].mxu0
  %1466 = vmatprep.mubr.bf16.mxu0 0
  %1467 = vmatmul.mubr.bf16.gmra.mrb[0].mxu0 %v1189
  %v1468 = vpop.f32.mrb[0].mxu0
  %v1469 = vadd.f32 0.0, %v1468
  %v1470 = vpop.f32.mrb[0].mxu0
  %v1471 = vpop.f32.mrb[0].mxu0
  %v1472 = vadd.f32 0.0, %v1471
  %v1473 = vpop.f32.mrb[0].mxu0
  %1474 = vmatprep.mubr.bf16.mxu0 0
  %1475 = vmatmul.mubr.bf16.gmra.mrb[0].mxu0 %v1192
  %v1476 = vpop.f32.mrb[0].mxu0
  %v1477 = vadd.f32 0.0, %v1476
  %v1478 = vpop.f32.mrb[0].mxu0
  %v1479 = vpop.f32.mrb[0].mxu0
  %v1480 = vadd.f32 0.0, %v1479
  %v1481 = vpop.f32.mrb[0].mxu0
  %1482 = vdwg.mxu0
  %v1483 = vpack.c.bf16 %v1232, %v1229
  %v1484 = vpack.c.bf16 %v1240, %v1237
  %v1485 = vpack.c.bf16 %v1248, %v1245
  %v1486 = vpack.c.bf16 %v1256, %v1253
  %v1487 = vpack.c.bf16 %v1264, %v1261
  %v1488 = vpack.c.bf16 %v1272, %v1269
  %v1489 = vpack.c.bf16 %v1280, %v1277
  %v1490 = vpack.c.bf16 %v1288, %v1285
  %v1491 = vpack.c.bf16 %v1296, %v1293
  %v1492 = vpack.c.bf16 %v1304, %v1301
  %v1493 = vpack.c.bf16 %v1312, %v1309
  %v1494 = vpack.c.bf16 %v1320, %v1317
  %v1495 = vpack.c.bf16 %v1328, %v1325
  %v1496 = vpack.c.bf16 %v1336, %v1333
  %v1497 = vpack.c.bf16 %v1344, %v1341
  %v1498 = vpack.c.bf16 %v1352, %v1349
  %v1499 = vpack.c.bf16 %v1360, %v1357
  %v1500 = vpack.c.bf16 %v1368, %v1365
  %v1501 = vpack.c.bf16 %v1376, %v1373
  %v1502 = vpack.c.bf16 %v1384, %v1381
  %v1503 = vpack.c.bf16 %v1392, %v1389
  %v1504 = vpack.c.bf16 %v1400, %v1397
  %v1505 = vpack.c.bf16 %v1408, %v1405
  %v1506 = vpack.c.bf16 %v1416, %v1413
  %v1507 = vpack.c.bf16 %v1424, %v1421
  %v1508 = vpack.c.bf16 %v1432, %v1429
  %v1509 = vpack.c.bf16 %v1440, %v1437
  %v1510 = vpack.c.bf16 %v1448, %v1445
  %v1511 = vpack.c.bf16 %v1456, %v1453
  %v1512 = vpack.c.bf16 %v1464, %v1461
  %v1513 = vpack.c.bf16 %v1472, %v1469
  %v1514 = vpack.c.bf16 %v1480, %v1477
  %v1547 = vunpack.c.l.b16 %v1483
  %v1548 = vunpack.c.h.b16 %v1483
  %v1549 = vunpack.c.l.b16 %v1484
  %v1550 = vunpack.c.h.b16 %v1484
  %v1551 = vunpack.c.l.b16 %v1485
  %v1552 = vunpack.c.h.b16 %v1485
  %v1553 = vunpack.c.l.b16 %v1486
  %v1554 = vunpack.c.h.b16 %v1486
  %v1555 = vunpack.c.l.b16 %v1487
  %v1556 = vunpack.c.h.b16 %v1487
  %v1557 = vunpack.c.l.b16 %v1488
  %v1558 = vunpack.c.h.b16 %v1488
  %v1559 = vunpack.c.l.b16 %v1489
  %v1560 = vunpack.c.h.b16 %v1489
  %v1561 = vunpack.c.l.b16 %v1490
  %v1562 = vunpack.c.h.b16 %v1490
  %v1563 = vunpack.c.l.b16 %v1491
  %v1564 = vunpack.c.h.b16 %v1491
  %v1565 = vunpack.c.l.b16 %v1492
  %v1566 = vunpack.c.h.b16 %v1492
  %v1567 = vunpack.c.l.b16 %v1493
  %v1568 = vunpack.c.h.b16 %v1493
  %v1569 = vunpack.c.l.b16 %v1494
  %v1570 = vunpack.c.h.b16 %v1494
  %v1571 = vunpack.c.l.b16 %v1495
  %v1572 = vunpack.c.h.b16 %v1495
  %v1573 = vunpack.c.l.b16 %v1496
  %v1574 = vunpack.c.h.b16 %v1496
  %v1575 = vunpack.c.l.b16 %v1497
  %v1576 = vunpack.c.h.b16 %v1497
  %v1577 = vunpack.c.l.b16 %v1498
  %v1578 = vunpack.c.h.b16 %v1498
  %v1579 = vunpack.c.l.b16 %v1499
  %v1580 = vunpack.c.h.b16 %v1499
  %v1581 = vunpack.c.l.b16 %v1500
  %v1582 = vunpack.c.h.b16 %v1500
  %v1583 = vunpack.c.l.b16 %v1501
  %v1584 = vunpack.c.h.b16 %v1501
  %v1585 = vunpack.c.l.b16 %v1502
  %v1586 = vunpack.c.h.b16 %v1502
  %v1587 = vunpack.c.l.b16 %v1503
  %v1588 = vunpack.c.h.b16 %v1503
  %v1589 = vunpack.c.l.b16 %v1504
  %v1590 = vunpack.c.h.b16 %v1504
  %v1591 = vunpack.c.l.b16 %v1505
  %v1592 = vunpack.c.h.b16 %v1505
  %v1593 = vunpack.c.l.b16 %v1506
  %v1594 = vunpack.c.h.b16 %v1506
  %v1595 = vunpack.c.l.b16 %v1507
  %v1596 = vunpack.c.h.b16 %v1507
  %v1597 = vunpack.c.l.b16 %v1508
  %v1598 = vunpack.c.h.b16 %v1508
  %v1599 = vunpack.c.l.b16 %v1509
  %v1600 = vunpack.c.h.b16 %v1509
  %v1601 = vunpack.c.l.b16 %v1510
  %v1602 = vunpack.c.h.b16 %v1510
  %v1603 = vunpack.c.l.b16 %v1511
  %v1604 = vunpack.c.h.b16 %v1511
  %v1605 = vunpack.c.l.b16 %v1512
  %v1606 = vunpack.c.h.b16 %v1512
  %v1607 = vunpack.c.l.b16 %v1513
  %v1608 = vunpack.c.h.b16 %v1513
  %v1609 = vunpack.c.l.b16 %v1514
  %v1610 = vunpack.c.h.b16 %v1514
  %v1611 = vpack.c.b16 %v1547, %v1547
  %v1612 = vpack.c.b16 %v1548, %v1548
  %v1613 = vpack.c.b16 %v1549, %v1549
  %v1614 = vpack.c.b16 %v1550, %v1550
  %v1615 = vpack.c.b16 %v1551, %v1551
  %v1616 = vpack.c.b16 %v1552, %v1552
  %v1617 = vpack.c.b16 %v1553, %v1553
  %v1618 = vpack.c.b16 %v1554, %v1554
  %v1619 = vpack.c.b16 %v1555, %v1555
  %v1620 = vpack.c.b16 %v1556, %v1556
  %v1621 = vpack.c.b16 %v1557, %v1557
  %v1622 = vpack.c.b16 %v1558, %v1558
  %v1623 = vpack.c.b16 %v1559, %v1559
  %v1624 = vpack.c.b16 %v1560, %v1560
  %v1625 = vpack.c.b16 %v1561, %v1561
  %v1626 = vpack.c.b16 %v1562, %v1562
  %v1627 = vpack.c.b16 %v1563, %v1563
  %v1628 = vpack.c.b16 %v1564, %v1564
  %v1629 = vpack.c.b16 %v1565, %v1565
  %v1630 = vpack.c.b16 %v1566, %v1566
  %v1631 = vpack.c.b16 %v1567, %v1567
  %v1632 = vpack.c.b16 %v1568, %v1568
  %v1633 = vpack.c.b16 %v1569, %v1569
  %v1634 = vpack.c.b16 %v1570, %v1570
  %v1635 = vpack.c.b16 %v1571, %v1571
  %v1636 = vpack.c.b16 %v1572, %v1572
  %v1637 = vpack.c.b16 %v1573, %v1573
  %v1638 = vpack.c.b16 %v1574, %v1574
  %v1639 = vpack.c.b16 %v1575, %v1575
  %v1640 = vpack.c.b16 %v1576, %v1576
  %v1641 = vpack.c.b16 %v1577, %v1577
  %v1642 = vpack.c.b16 %v1578, %v1578
  %v1643 = vpack.c.b16 %v1579, %v1579
  %v1644 = vpack.c.b16 %v1580, %v1580
  %v1645 = vpack.c.b16 %v1581, %v1581
  %v1646 = vpack.c.b16 %v1582, %v1582
  %v1647 = vpack.c.b16 %v1583, %v1583
  %v1648 = vpack.c.b16 %v1584, %v1584
  %v1649 = vpack.c.b16 %v1585, %v1585
  %v1650 = vpack.c.b16 %v1586, %v1586
  %v1651 = vpack.c.b16 %v1587, %v1587
  %v1652 = vpack.c.b16 %v1588, %v1588
  %v1653 = vpack.c.b16 %v1589, %v1589
  %v1654 = vpack.c.b16 %v1590, %v1590
  %v1655 = vpack.c.b16 %v1591, %v1591
  %v1656 = vpack.c.b16 %v1592, %v1592
  %v1657 = vpack.c.b16 %v1593, %v1593
  %v1658 = vpack.c.b16 %v1594, %v1594
  %v1659 = vpack.c.b16 %v1595, %v1595
  %v1660 = vpack.c.b16 %v1596, %v1596
  %v1661 = vpack.c.b16 %v1597, %v1597
  %v1662 = vpack.c.b16 %v1598, %v1598
  %v1663 = vpack.c.b16 %v1599, %v1599
  %v1664 = vpack.c.b16 %v1600, %v1600
  %v1665 = vpack.c.b16 %v1601, %v1601
  %v1666 = vpack.c.b16 %v1602, %v1602
  %v1667 = vpack.c.b16 %v1603, %v1603
  %v1668 = vpack.c.b16 %v1604, %v1604
  %v1669 = vpack.c.b16 %v1605, %v1605
  %v1670 = vpack.c.b16 %v1606, %v1606
  %v1671 = vpack.c.b16 %v1607, %v1607
  %v1672 = vpack.c.b16 %v1608, %v1608
  %v1673 = vpack.c.b16 %v1609, %v1609
  %v1674 = vpack.c.b16 %v1610, %v1610
  %vm1739 = vcmask 388096
  %1740 = vst.msk [vmem:[%s4] sm:$0xf] %vm1739, %v1611
  %1741 = vst.msk [vmem:[%s4 + $0x4] sm:$0xf] %vm1739, %v1612
  %1742 = vst.msk [vmem:[%s4 + $0x8] sm:$0xf] %vm1739, %v1613
  %1743 = vst.msk [vmem:[%s4 + $0xc] sm:$0xf] %vm1739, %v1614
  %1744 = vst.msk [vmem:[%s4 + $0x10] sm:$0xf] %vm1739, %v1615
  %1745 = vst.msk [vmem:[%s4 + $0x14] sm:$0xf] %vm1739, %v1616
  %1746 = vst.msk [vmem:[%s4 + $0x18] sm:$0xf] %vm1739, %v1617
  %1747 = vst.msk [vmem:[%s4 + $0x1c] sm:$0xf] %vm1739, %v1618
  %1748 = vst.msk [vmem:[%s4 + $0x20] sm:$0xf] %vm1739, %v1619
  %1749 = vst.msk [vmem:[%s4 + $0x24] sm:$0xf] %vm1739, %v1620
  %1750 = vst.msk [vmem:[%s4 + $0x28] sm:$0xf] %vm1739, %v1621
  %1751 = vst.msk [vmem:[%s4 + $0x2c] sm:$0xf] %vm1739, %v1622
  %1752 = vst.msk [vmem:[%s4 + $0x30] sm:$0xf] %vm1739, %v1623
  %1753 = vst.msk [vmem:[%s4 + $0x34] sm:$0xf] %vm1739, %v1624
  %1754 = vst.msk [vmem:[%s4 + $0x38] sm:$0xf] %vm1739, %v1625
  %1755 = vst.msk [vmem:[%s4 + $0x3c] sm:$0xf] %vm1739, %v1626
  %1756 = vst.msk [vmem:[%s4 + $0x40] sm:$0xf] %vm1739, %v1627
  %1757 = vst.msk [vmem:[%s4 + $0x44] sm:$0xf] %vm1739, %v1628
  %1758 = vst.msk [vmem:[%s4 + $0x48] sm:$0xf] %vm1739, %v1629
  %1759 = vst.msk [vmem:[%s4 + $0x4c] sm:$0xf] %vm1739, %v1630
  %1760 = vst.msk [vmem:[%s4 + $0x50] sm:$0xf] %vm1739, %v1631
  %1761 = vst.msk [vmem:[%s4 + $0x54] sm:$0xf] %vm1739, %v1632
  %1762 = vst.msk [vmem:[%s4 + $0x58] sm:$0xf] %vm1739, %v1633
  %1763 = vst.msk [vmem:[%s4 + $0x5c] sm:$0xf] %vm1739, %v1634
  %1764 = vst.msk [vmem:[%s4 + $0x60] sm:$0xf] %vm1739, %v1635
  %1765 = vst.msk [vmem:[%s4 + $0x64] sm:$0xf] %vm1739, %v1636
  %1766 = vst.msk [vmem:[%s4 + $0x68] sm:$0xf] %vm1739, %v1637
  %1767 = vst.msk [vmem:[%s4 + $0x6c] sm:$0xf] %vm1739, %v1638
  %1768 = vst.msk [vmem:[%s4 + $0x70] sm:$0xf] %vm1739, %v1639
  %1769 = vst.msk [vmem:[%s4 + $0x74] sm:$0xf] %vm1739, %v1640
  %1770 = vst.msk [vmem:[%s4 + $0x78] sm:$0xf] %vm1739, %v1641
  %1771 = vst.msk [vmem:[%s4 + $0x7c] sm:$0xf] %vm1739, %v1642
  %1772 = vst.msk [vmem:[%s4 + $0x80] sm:$0xf] %vm1739, %v1643
  %1773 = vst.msk [vmem:[%s4 + $0x84] sm:$0xf] %vm1739, %v1644
  %1774 = vst.msk [vmem:[%s4 + $0x88] sm:$0xf] %vm1739, %v1645
  %1775 = vst.msk [vmem:[%s4 + $0x8c] sm:$0xf] %vm1739, %v1646
  %1776 = vst.msk [vmem:[%s4 + $0x90] sm:$0xf] %vm1739, %v1647
  %1777 = vst.msk [vmem:[%s4 + $0x94] sm:$0xf] %vm1739, %v1648
  %1778 = vst.msk [vmem:[%s4 + $0x98] sm:$0xf] %vm1739, %v1649
  %1779 = vst.msk [vmem:[%s4 + $0x9c] sm:$0xf] %vm1739, %v1650
  %1780 = vst.msk [vmem:[%s4 + $0xa0] sm:$0xf] %vm1739, %v1651
  %1781 = vst.msk [vmem:[%s4 + $0xa4] sm:$0xf] %vm1739, %v1652
  %1782 = vst.msk [vmem:[%s4 + $0xa8] sm:$0xf] %vm1739, %v1653
  %1783 = vst.msk [vmem:[%s4 + $0xac] sm:$0xf] %vm1739, %v1654
  %1784 = vst.msk [vmem:[%s4 + $0xb0] sm:$0xf] %vm1739, %v1655
  %1785 = vst.msk [vmem:[%s4 + $0xb4] sm:$0xf] %vm1739, %v1656
  %1786 = vst.msk [vmem:[%s4 + $0xb8] sm:$0xf] %vm1739, %v1657
  %1787 = vst.msk [vmem:[%s4 + $0xbc] sm:$0xf] %vm1739, %v1658
  %1788 = vst.msk [vmem:[%s4 + $0xc0] sm:$0xf] %vm1739, %v1659
  %1789 = vst.msk [vmem:[%s4 + $0xc4] sm:$0xf] %vm1739, %v1660
  %1790 = vst.msk [vmem:[%s4 + $0xc8] sm:$0xf] %vm1739, %v1661
  %1791 = vst.msk [vmem:[%s4 + $0xcc] sm:$0xf] %vm1739, %v1662
  %1792 = vst.msk [vmem:[%s4 + $0xd0] sm:$0xf] %vm1739, %v1663
  %1793 = vst.msk [vmem:[%s4 + $0xd4] sm:$0xf] %vm1739, %v1664
  %1794 = vst.msk [vmem:[%s4 + $0xd8] sm:$0xf] %vm1739, %v1665
  %1795 = vst.msk [vmem:[%s4 + $0xdc] sm:$0xf] %vm1739, %v1666
  %1796 = vst.msk [vmem:[%s4 + $0xe0] sm:$0xf] %vm1739, %v1667
  %1797 = vst.msk [vmem:[%s4 + $0xe4] sm:$0xf] %vm1739, %v1668
  %1798 = vst.msk [vmem:[%s4 + $0xe8] sm:$0xf] %vm1739, %v1669
  %1799 = vst.msk [vmem:[%s4 + $0xec] sm:$0xf] %vm1739, %v1670
  %1800 = vst.msk [vmem:[%s4 + $0xf0] sm:$0xf] %vm1739, %v1671
  %1801 = vst.msk [vmem:[%s4 + $0xf4] sm:$0xf] %vm1739, %v1672
  %1802 = vst.msk [vmem:[%s4 + $0xf8] sm:$0xf] %vm1739, %v1673
  %1803 = vst.msk [vmem:[%s4 + $0xfc] sm:$0xf] %vm1739, %v1674
  // Predicated region
  $region18: #{tpu_custom_call.1} parent=0 // pred_check
    _
  $region19: #{tpu_custom_call.1} parent=0 // pred_check_branch
    %1805 = sbr.rel (0) target = $region21
  $region20: #{tpu_custom_call.1} parent=0 // pred_region
    _
  $region21: #{tpu_custom_call.1} parent=0 // pred_fallthru
    _
  // Predicated region
  $region22: #{tpu_custom_call.1} parent=0 // pred_check
    _
  $region23: #{tpu_custom_call.1} parent=0 // pred_check_branch
    %1807 = sbr.rel (0) target = $region25
  $region24: #{tpu_custom_call.1} parent=0 // pred_region
    _
  $region25: #{tpu_custom_call.1} parent=0 // pred_fallthru
    _

</llo_original>
